<compile_context>
chip_gen: v6e
topology: v6e:2x2x1
jax: 0.10.0
libtpu: 0.0.40
codegen_flags: <defaults>
</compile_context>

<pallas_src>
import jax
import jax.numpy as jnp
from jax.experimental import pallas as pl
from jax.experimental.pallas import tpu as pltpu

H1 = 512
H2 = 256
LEAK = 0.2


def discriminator_kernel(x_ref, w1_ref, b1_ref, w2_ref, b2_ref, w3_ref, b3_ref,
                         o_ref):
    """Fused MLP forward on one batch tile.

    x_ref : (TB, in_dim) f32   -- cast to bf16 in-kernel (no extra HBM pass)
    w1/w2 : bf16 weights, VMEM-resident via constant index_maps
    o_ref : (1, TB) f32        -- lane-dense logits row
    """
    x = x_ref[...].astype(jnp.bfloat16)                               # (TB, K) bf16

    # Layer 1: (TB, K) @ (K, 512), bf16 operands, f32 accumulation on the MXU.
    h1 = jnp.dot(x, w1_ref[...], preferred_element_type=jnp.float32)
    h1 = h1 + b1_ref[...]
    h1 = jnp.maximum(h1, LEAK * h1)                                   # f32 LeakyReLU

    # Layer 2: (TB, 512) @ (512, 256), bf16 operands, f32 accumulation.
    h2 = jnp.dot(h1.astype(jnp.bfloat16), w2_ref[...],
                 preferred_element_type=jnp.float32)
    h2 = h2 + b2_ref[...]
    h2 = jnp.maximum(h2, LEAK * h2)                                   # f32 LeakyReLU

    # Layer 3 (256 -> 1): produce a lane-dense (1, TB) row directly by
    # contracting the 256 axis of both operands (M=1 pass, f32).
    logits = jnp.einsum('ok,bk->ob', w3_ref[...], h2,
                        preferred_element_type=jnp.float32) + b3_ref[...]
    o_ref[...] = logits.astype(o_ref.dtype)                           # (1, TB)


def _round_up(x, m):
    return (x + m - 1) // m * m


def _choose_tiling(B):
    """Pick (tile_rows, padded_batch).

    Small batches: one full tile (no padding beyond 8-row sublane alignment,
    no dead MXU work).  Larger batches: 128-aligned tile <= 512 rows, sized so
    the grid has >= 2 steps (v7x has two TensorCores to shard across), which
    also keeps the lane-dense (1, tb) output block legal (tb % 128 == 0).
    """
    b8 = _round_up(B, 8)
    if b8 <= 256:
        return b8, b8
    b_pad = _round_up(b8, 128)
    tb = min(512, _round_up(pl.cdiv(b_pad, 2), 128))
    b_pad = _round_up(b_pad, tb)
    return tb, b_pad


@jax.jit
def discriminator_forward(img, params):
    """img: (B, C, H, W) float32.  Returns validity logits (B, 1) float32."""
    w1, b1, w2, b2, w3, b3 = params
    B = img.shape[0]
    x = img.reshape(B, -1).astype(jnp.float32)        # img.view(B, -1), stays f32
    in_dim = x.shape[1]

    tb, b_pad = _choose_tiling(B)
    if b_pad != B:
        # Padded rows produce bias-driven garbage that is sliced off below.
        x = jnp.pad(x, ((0, b_pad - B), (0, 0)))
    n_steps = b_pad // tb

    # Weights cast once (tiny); activations are cast per-tile inside the kernel.
    w1_b = w1.astype(jnp.bfloat16)                     # (in_dim, 512)
    w2_b = w2.astype(jnp.bfloat16)                     # (512, 256)
    w3_row = w3.reshape(1, H2).astype(jnp.float32)     # (256, 1) -> (1, 256)

    flops = 2 * b_pad * (in_dim * H1 + H1 * H2 + H2)
    bytes_accessed = (
        x.size * 4                                     # f32 activations in
        + w1_b.size * 2 + w2_b.size * 2                # bf16 weights (resident)
        + (b1.size + b2.size + w3_row.size + b3.size) * 4
        + b_pad * 4                                    # f32 logits out
    )

    out_row = pl.pallas_call(
        discriminator_kernel,
        out_shape=jax.ShapeDtypeStruct((1, b_pad), jnp.float32),
        grid=(n_steps,),
        in_specs=[
            pl.BlockSpec((tb, in_dim), lambda i: (i, 0)),    # x tile (pipelined)
            pl.BlockSpec((in_dim, H1), lambda i: (0, 0)),    # w1 (VMEM-resident)
            pl.BlockSpec((1, H1), lambda i: (0, 0)),         # b1
            pl.BlockSpec((H1, H2), lambda i: (0, 0)),        # w2
            pl.BlockSpec((1, H2), lambda i: (0, 0)),         # b2
            pl.BlockSpec((1, H2), lambda i: (0, 0)),         # w3 row
            pl.BlockSpec((1, 1), lambda i: (0, 0)),          # b3
        ],
        out_specs=pl.BlockSpec((1, tb), lambda i: (0, i)),   # lane-dense logits
        compiler_params=pltpu.CompilerParams(
            dimension_semantics=("parallel",),
            vmem_limit_bytes=(32 << 20) if tb >= 512 else (16 << 20),
        ),
        cost_estimate=pl.CostEstimate(
            flops=flops, transcendentals=0, bytes_accessed=bytes_accessed),
    )(x, w1_b, b1, w2_b, b2, w3_row, b3)

    return out_row[0, :B].reshape(B, 1)


def init_params(key, in_dim):
    """Deterministic synthetic parameters matching nn.Linear shapes.

    PyTorch stores Linear weights as (out, in); we keep the transposed
    (in, out) layout so the kernel does x @ W directly.  Biases are (1, out)
    rows for clean 2-D broadcasting on TPU.  (Real PyTorch weights must be
    transposed when loading.)
    """
    k1, k2, k3, k4, k5, k6 = jax.random.split(key, 6)
    scale = 0.05
    w1 = scale * jax.random.normal(k1, (in_dim, H1), jnp.float32)
    b1 = scale * jax.random.normal(k2, (1, H1), jnp.float32)
    w2 = scale * jax.random.normal(k3, (H1, H2), jnp.float32)
    b2 = scale * jax.random.normal(k4, (1, H2), jnp.float32)
    w3 = scale * jax.random.normal(k5, (H2, 1), jnp.float32)
    b3 = scale * jax.random.normal(k6, (1, 1), jnp.float32)
    return (w1, b1, w2, b2, w3, b3)


def reference_forward(img, params):
    """Pure-JAX reference with the same bf16-operand / f32-accumulate recipe."""
    w1, b1, w2, b2, w3, b3 = params
    x = img.reshape(img.shape[0], -1)
    h1 = jnp.dot(x.astype(jnp.bfloat16), w1.astype(jnp.bfloat16),
                 preferred_element_type=jnp.float32) + b1
    h1 = jnp.where(h1 > 0, h1, LEAK * h1)
    h2 = jnp.dot(h1.astype(jnp.bfloat16), w2.astype(jnp.bfloat16),
                 preferred_element_type=jnp.float32) + b2
    h2 = jnp.where(h2 > 0, h2, LEAK * h2)
    return h2 @ w3 + b3


if __name__ == "__main__":
    key = jax.random.PRNGKey(0)
    k_img, k_par = jax.random.split(key)

    # img_shape = (1, 28, 28) as in the doctest -> flattened dim = 784
    B, C, H, W = 8, 1, 28, 28
    img = jax.random.normal(k_img, (B, C, H, W), jnp.float32)
    params = init_params(k_par, C * H * W)

    out = discriminator_forward(img, params)
    out = jax.block_until_ready(out)

    ref = reference_forward(img, params)
    assert out.shape == (B, 1)
    assert jnp.allclose(out, ref, atol=1e-2, rtol=1e-2), (
        float(jnp.max(jnp.abs(out - ref))))

    print("KERNEL_OK")
</pallas_src>

<mosaic_0001>
module attributes {stable_mosaic.version = 11 : i64} {
  func.func @discriminator_kernel(%arg0: i32, %arg1: memref<8x784xf32, #tpu.memory_space<vmem>>, %arg2: memref<784x512xbf16, #tpu.memory_space<vmem>>, %arg3: memref<1x512xf32, #tpu.memory_space<vmem>>, %arg4: memref<512x256xbf16, #tpu.memory_space<vmem>>, %arg5: memref<1x256xf32, #tpu.memory_space<vmem>>, %arg6: memref<1x256xf32, #tpu.memory_space<vmem>>, %arg7: memref<1x1xf32, #tpu.memory_space<vmem>>, %arg8: memref<1x8xf32, #tpu.memory_space<vmem>>) attributes {dimension_semantics = [#tpu.dimension_semantics<parallel>], iteration_bounds = array<i64: 1>, scalar_prefetch = 0 : i64, scratch_operands = 0 : i64, tpu.core_type = #tpu.core_type<tc>, window_params = [{transform_indices = @transform_0, window_bounds = array<i64: 8, 784>}, {pipeline_mode = #tpu.pipeline_mode<synchronous>, transform_indices = @transform_1, window_bounds = array<i64: 784, 512>}, {pipeline_mode = #tpu.pipeline_mode<synchronous>, transform_indices = @transform_2, window_bounds = array<i64: 1, 512>}, {pipeline_mode = #tpu.pipeline_mode<synchronous>, transform_indices = @transform_3, window_bounds = array<i64: 512, 256>}, {pipeline_mode = #tpu.pipeline_mode<synchronous>, transform_indices = @transform_4, window_bounds = array<i64: 1, 256>}, {pipeline_mode = #tpu.pipeline_mode<synchronous>, transform_indices = @transform_5, window_bounds = array<i64: 1, 256>}, {pipeline_mode = #tpu.pipeline_mode<synchronous>, transform_indices = @transform_6, window_bounds = array<i64: 1, 1>}, {transform_indices = @transform_7, window_bounds = array<i64: 1, 8>}]} {
    %c0 = arith.constant 0 : index
    %c0_0 = arith.constant 0 : index
    %0 = vector.load %arg1[%c0, %c0_0] : memref<8x784xf32, #tpu.memory_space<vmem>>, vector<8x784xf32>
    %1 = arith.truncf %0 : vector<8x784xf32> to vector<8x784xbf16>
    %c0_1 = arith.constant 0 : index
    %c0_2 = arith.constant 0 : index
    %2 = vector.load %arg2[%c0_1, %c0_2] : memref<784x512xbf16, #tpu.memory_space<vmem>>, vector<784x512xbf16>
    %cst = arith.constant dense<0.000000e+00> : vector<8x512xf32>
    %3 = tpu.matmul %1, %2, %cst {dimension_numbers = #tpu.dot_dimension_numbers<[1], [0], [0], [1], [0, 0, 1, 1], [], []>} : vector<8x784xbf16>, vector<784x512xbf16>, vector<8x512xf32> -> vector<8x512xf32>
    %c0_3 = arith.constant 0 : index
    %c0_4 = arith.constant 0 : index
    %4 = vector.load %arg3[%c0_3, %c0_4] : memref<1x512xf32, #tpu.memory_space<vmem>>, vector<1x512xf32>
    %5 = vector.broadcast %4 : vector<1x512xf32> to vector<8x512xf32>
    %6 = arith.addf %3, %5 : vector<8x512xf32>
    %cst_5 = arith.constant 2.000000e-01 : f32
    %7 = vector.broadcast %cst_5 : f32 to vector<8x512xf32>
    %8 = arith.mulf %7, %6 : vector<8x512xf32>
    %9 = arith.maximumf %6, %8 : vector<8x512xf32>
    %10 = arith.truncf %9 : vector<8x512xf32> to vector<8x512xbf16>
    %c0_6 = arith.constant 0 : index
    %c0_7 = arith.constant 0 : index
    %11 = vector.load %arg4[%c0_6, %c0_7] : memref<512x256xbf16, #tpu.memory_space<vmem>>, vector<512x256xbf16>
    %cst_8 = arith.constant dense<0.000000e+00> : vector<8x256xf32>
    %12 = tpu.matmul %10, %11, %cst_8 {dimension_numbers = #tpu.dot_dimension_numbers<[1], [0], [0], [1], [0, 0, 1, 1], [], []>} : vector<8x512xbf16>, vector<512x256xbf16>, vector<8x256xf32> -> vector<8x256xf32>
    %c0_9 = arith.constant 0 : index
    %c0_10 = arith.constant 0 : index
    %13 = vector.load %arg5[%c0_9, %c0_10] : memref<1x256xf32, #tpu.memory_space<vmem>>, vector<1x256xf32>
    %14 = vector.broadcast %13 : vector<1x256xf32> to vector<8x256xf32>
    %15 = arith.addf %12, %14 : vector<8x256xf32>
    %cst_11 = arith.constant 2.000000e-01 : f32
    %16 = vector.broadcast %cst_11 : f32 to vector<8x256xf32>
    %17 = arith.mulf %16, %15 : vector<8x256xf32>
    %18 = arith.maximumf %15, %17 : vector<8x256xf32>
    %c0_12 = arith.constant 0 : index
    %c0_13 = arith.constant 0 : index
    %19 = vector.load %arg6[%c0_12, %c0_13] : memref<1x256xf32, #tpu.memory_space<vmem>>, vector<1x256xf32>
    "tpu.trace_start"() <{level = 10 : i32, message = "ok,bk->ob"}> : () -> ()
    %cst_14 = arith.constant dense<0.000000e+00> : vector<1x8xf32>
    %20 = tpu.matmul %19, %18, %cst_14 {dimension_numbers = #tpu.dot_dimension_numbers<[1], [1], [0], [0], [0, 0, 1, 0], [], []>} : vector<1x256xf32>, vector<8x256xf32>, vector<1x8xf32> -> vector<1x8xf32>
    "tpu.trace_stop"() : () -> ()
    %c0_15 = arith.constant 0 : index
    %c0_16 = arith.constant 0 : index
    %21 = vector.load %arg7[%c0_15, %c0_16] : memref<1x1xf32, #tpu.memory_space<vmem>>, vector<1x1xf32>
    %22 = vector.broadcast %21 : vector<1x1xf32> to vector<1x8xf32>
    %23 = arith.addf %20, %22 : vector<1x8xf32>
    %c0_17 = arith.constant 0 : index
    %c0_18 = arith.constant 0 : index
    %24 = vector.load %arg8[%c0_17, %c0_18] : memref<1x8xf32, #tpu.memory_space<vmem>>, vector<1x8xf32>
    tpu.vector_store %arg8[%c0_17, %c0_18], %23 {strides = array<i32>} : memref<1x8xf32, #tpu.memory_space<vmem>>, vector<1x8xf32>,
    return
  }
  func.func @transform_0(%arg0: i32) -> (i32, i32) {
    %c0_i32 = arith.constant 0 : i32
    %c0_i32_0 = arith.constant 0 : i32
    return %arg0, %c0_i32 : i32, i32
  }
  func.func @transform_1(%arg0: i32) -> (i32, i32) {
    %c0_i32 = arith.constant 0 : i32
    %c0_i32_0 = arith.constant 0 : i32
    %c0_i32_1 = arith.constant 0 : i32
    return %c0_i32, %c0_i32_0 : i32, i32
  }
  func.func @transform_2(%arg0: i32) -> (i32, i32) {
    %c0_i32 = arith.constant 0 : i32
    %c0_i32_0 = arith.constant 0 : i32
    %c0_i32_1 = arith.constant 0 : i32
    return %c0_i32, %c0_i32_0 : i32, i32
  }
  func.func @transform_3(%arg0: i32) -> (i32, i32) {
    %c0_i32 = arith.constant 0 : i32
    %c0_i32_0 = arith.constant 0 : i32
    %c0_i32_1 = arith.constant 0 : i32
    return %c0_i32, %c0_i32_0 : i32, i32
  }
  func.func @transform_4(%arg0: i32) -> (i32, i32) {
    %c0_i32 = arith.constant 0 : i32
    %c0_i32_0 = arith.constant 0 : i32
    %c0_i32_1 = arith.constant 0 : i32
    return %c0_i32, %c0_i32_0 : i32, i32
  }
  func.func @transform_5(%arg0: i32) -> (i32, i32) {
    %c0_i32 = arith.constant 0 : i32
    %c0_i32_0 = arith.constant 0 : i32
    %c0_i32_1 = arith.constant 0 : i32
    return %c0_i32, %c0_i32_0 : i32, i32
  }
  func.func @transform_6(%arg0: i32) -> (i32, i32) {
    %c0_i32 = arith.constant 0 : i32
    %c0_i32_0 = arith.constant 0 : i32
    %c0_i32_1 = arith.constant 0 : i32
    return %c0_i32, %c0_i32_0 : i32, i32
  }
  func.func @transform_7(%arg0: i32) -> (i32, i32) {
    %c0_i32 = arith.constant 0 : i32
    %c0_i32_0 = arith.constant 0 : i32
    return %c0_i32, %arg0 : i32, i32
  }
}

</mosaic_0001>

<llo_original>
// kernel: discriminator_forward.1
$region0: #{discriminator_forward.1}
  #allocation0 [shape = 'u32[]', space=smem, size = 0x4, offset = 0x4, fixed_abs, tag = 'smem constant byte address 0x4 - core index']
  #allocation1 [shape = 'u32[144,128]{1,0:T(1,128)}', space=vmem, size = 0x12000, scoped, tag = 'internal scratch']
  #allocation2 [shape = 'f32[1,1]{1,0:T(1,128)S(1)}', space=vmem, size = 0x200, scoped, tag = 'scoped memory for discriminator_forward.1']
  %s0 = inlined_call_operand.vmem [shape: f32[8,784], index: 0, kind: input, shape index: {}]
  %s1 = inlined_call_operand.vmem [shape: bf16[784,512], index: 1, kind: input, shape index: {}]
  %s2 = inlined_call_operand.vmem [shape: f32[1,512], index: 2, kind: input, shape index: {}]
  %s3 = inlined_call_operand.vmem [shape: bf16[512,256], index: 3, kind: input, shape index: {}]
  %s4 = inlined_call_operand.vmem [shape: f32[1,256], index: 4, kind: input, shape index: {}]
  %s5 = inlined_call_operand.vmem [shape: f32[1,256], index: 5, kind: input, shape index: {}]
  %s6 = inlined_call_operand.<no memory space> [shape: f32[1,1], index: 6, kind: input, shape index: {}]
  %s7 = inlined_call_operand.hbm [shape: f32[1,8], index: 7, kind: output, shape index: {}]
  %s8 = sld [smem:[#allocation0]]
  $region38: #{discriminator_forward.1} parent=0
    _
  %s10 = ssub.s32 1, %s8
  %s11 = scalar_select 0, %s10, %s8
  %v12 = vstv %s6
  %13 = vst [vmem:[#allocation2] sm:$0x1] %v12
  $region1: #{discriminator_forward.1} parent=0
    #allocation3 [shape = 'u8[512]{0}', space=vmem, size = 0x400, scoped, tag = 'output window, operand 0, single buffered']
    #allocation4 [shape = 's32[1]{0}', space=sflag, size = 0x4, scoped, tag = 'scoped memory for discriminator_forward.1']
    %14 = vsyncpa [#allocation4], 0
    // Predicated region
    $region2: #{discriminator_forward.1} parent=1 // pred_check
      _
    $region3: #{discriminator_forward.1} parent=1 // pred_check_branch
      %16 = sbr.rel (0) target = $region5
    $region4: #{discriminator_forward.1} parent=1 // pred_region
      _
    $region5: #{discriminator_forward.1} parent=1 // pred_fallthru
      _
    // Predicated region
    $region6: #{discriminator_forward.1} parent=1 // pred_check
      _
    $region7: #{discriminator_forward.1} parent=1 // pred_check_branch
      %18 = sbr.rel (0) target = $region9
    $region8: #{discriminator_forward.1} parent=1 // pred_region
      _
    $region9: #{discriminator_forward.1} parent=1 // pred_fallthru
      _
    // Predicated region
    $region10: #{discriminator_forward.1} parent=1 // pred_check
      _
    $region11: #{discriminator_forward.1} parent=1 // pred_check_branch
      %20 = sbr.rel (0) target = $region13
    $region12: #{discriminator_forward.1} parent=1 // pred_region
      _
    $region13: #{discriminator_forward.1} parent=1 // pred_fallthru
      _
    // Predicated region
    $region14: #{discriminator_forward.1} parent=1 // pred_check
      _
    $region15: #{discriminator_forward.1} parent=1 // pred_check_branch
      %22 = sbr.rel (0) target = $region17
    $region16: #{discriminator_forward.1} parent=1 // pred_region
      _
    $region17: #{discriminator_forward.1} parent=1 // pred_fallthru
      _
    // Predicated region
    $region18: #{discriminator_forward.1} parent=1 // pred_check
      _
    $region19: #{discriminator_forward.1} parent=1 // pred_check_branch
      %24 = sbr.rel (0) target = $region21
    $region20: #{discriminator_forward.1} parent=1 // pred_region
      _
    $region21: #{discriminator_forward.1} parent=1 // pred_fallthru
      _
    // Predicated region
    $region22: #{discriminator_forward.1} parent=1 // pred_check
      _
    $region23: #{discriminator_forward.1} parent=1 // pred_check_branch
      %26 = sbr.rel (0) target = $region25
    $region24: #{discriminator_forward.1} parent=1 // pred_region
      _
    $region25: #{discriminator_forward.1} parent=1 // pred_fallthru
      _
    // Predicated region
    $region26: #{discriminator_forward.1} parent=1 // pred_check
      _
    $region27: #{discriminator_forward.1} parent=1 // pred_check_branch
      %28 = sbr.rel (0) target = $region29
    $region28: #{discriminator_forward.1} parent=1 // pred_region
      _
    $region29: #{discriminator_forward.1} parent=1 // pred_fallthru
      _
    %v30 = vld [vmem:[%s0] sm:$0xff]
    %v31 = vld [vmem:[%s0 + $0x8] sm:$0xff]
    %v32 = vld [vmem:[%s0 + $0x10] sm:$0xff]
    %v33 = vld [vmem:[%s0 + $0x18] sm:$0xff]
    %v34 = vld [vmem:[%s0 + $0x20] sm:$0xff]
    %v35 = vld [vmem:[%s0 + $0x28] sm:$0xff]
    %v36 = vld [vmem:[%s0 + $0x30] sm:$0xff]
    %v37 = vpack.c.bf16 %v30, %v30
    %v38 = vpack.c.bf16 %v31, %v31
    %v39 = vpack.c.bf16 %v32, %v32
    %v40 = vpack.c.bf16 %v33, %v33
    %v41 = vpack.c.bf16 %v34, %v34
    %v42 = vpack.c.bf16 %v35, %v35
    %v43 = vpack.c.bf16 %v36, %v36
    %v44 = vld [vmem:[%s1] sm:$0xff]
    %v45 = vld [vmem:[%s1 + $0x8] sm:$0xff]
    %v46 = vld [vmem:[%s1 + $0x10] sm:$0xff]
    %v47 = vld [vmem:[%s1 + $0x18] sm:$0xff]
    %v48 = vld [vmem:[%s1 + $0x20] sm:$0xff]
    %v49 = vld [vmem:[%s1 + $0x28] sm:$0xff]
    %v50 = vld [vmem:[%s1 + $0x30] sm:$0xff]
    %v51 = vld [vmem:[%s1 + $0x38] sm:$0xff]
    %v52 = vld [vmem:[%s1 + $0x40] sm:$0xff]
    %v53 = vld [vmem:[%s1 + $0x48] sm:$0xff]
    %v54 = vld [vmem:[%s1 + $0x50] sm:$0xff]
    %v55 = vld [vmem:[%s1 + $0x58] sm:$0xff]
    %v56 = vld [vmem:[%s1 + $0x60] sm:$0xff]
    %v57 = vld [vmem:[%s1 + $0x68] sm:$0xff]
    %v58 = vld [vmem:[%s1 + $0x70] sm:$0xff]
    %v59 = vld [vmem:[%s1 + $0x78] sm:$0xff]
    %v60 = vld [vmem:[%s1 + $0x80] sm:$0xff]
    %v61 = vld [vmem:[%s1 + $0x88] sm:$0xff]
    %v62 = vld [vmem:[%s1 + $0x90] sm:$0xff]
    %v63 = vld [vmem:[%s1 + $0x98] sm:$0xff]
    %v64 = vld [vmem:[%s1 + $0xa0] sm:$0xff]
    %v65 = vld [vmem:[%s1 + $0xa8] sm:$0xff]
    %v66 = vld [vmem:[%s1 + $0xb0] sm:$0xff]
    %v67 = vld [vmem:[%s1 + $0xb8] sm:$0xff]
    %v68 = vld [vmem:[%s1 + $0xc0] sm:$0xff]
    %v69 = vld [vmem:[%s1 + $0xc8] sm:$0xff]
    %v70 = vld [vmem:[%s1 + $0xd0] sm:$0xff]
    %v71 = vld [vmem:[%s1 + $0xd8] sm:$0xff]
    %v72 = vld [vmem:[%s1 + $0xe0] sm:$0xff]
    %v73 = vld [vmem:[%s1 + $0xe8] sm:$0xff]
    %v74 = vld [vmem:[%s1 + $0xf0] sm:$0xff]
    %v75 = vld [vmem:[%s1 + $0xf8] sm:$0xff]
    %v76 = vld [vmem:[%s1 + $0x100] sm:$0xff]
    %v77 = vld [vmem:[%s1 + $0x108] sm:$0xff]
    %v78 = vld [vmem:[%s1 + $0x110] sm:$0xff]
    %v79 = vld [vmem:[%s1 + $0x118] sm:$0xff]
    %v80 = vld [vmem:[%s1 + $0x120] sm:$0xff]
    %v81 = vld [vmem:[%s1 + $0x128] sm:$0xff]
    %v82 = vld [vmem:[%s1 + $0x130] sm:$0xff]
    %v83 = vld [vmem:[%s1 + $0x138] sm:$0xff]
    %v84 = vld [vmem:[%s1 + $0x140] sm:$0xff]
    %v85 = vld [vmem:[%s1 + $0x148] sm:$0xff]
    %v86 = vld [vmem:[%s1 + $0x150] sm:$0xff]
    %v87 = vld [vmem:[%s1 + $0x158] sm:$0xff]
    %v88 = vld [vmem:[%s1 + $0x160] sm:$0xff]
    %v89 = vld [vmem:[%s1 + $0x168] sm:$0xff]
    %v90 = vld [vmem:[%s1 + $0x170] sm:$0xff]
    %v91 = vld [vmem:[%s1 + $0x178] sm:$0xff]
    %v92 = vld [vmem:[%s1 + $0x180] sm:$0xff]
    %v93 = vld [vmem:[%s1 + $0x188] sm:$0xff]
    %v94 = vld [vmem:[%s1 + $0x190] sm:$0xff]
    %v95 = vld [vmem:[%s1 + $0x198] sm:$0xff]
    %v96 = vld [vmem:[%s1 + $0x1a0] sm:$0xff]
    %v97 = vld [vmem:[%s1 + $0x1a8] sm:$0xff]
    %v98 = vld [vmem:[%s1 + $0x1b0] sm:$0xff]
    %v99 = vld [vmem:[%s1 + $0x1b8] sm:$0xff]
    %v100 = vld [vmem:[%s1 + $0x1c0] sm:$0xff]
    %v101 = vld [vmem:[%s1 + $0x1c8] sm:$0xff]
    %v102 = vld [vmem:[%s1 + $0x1d0] sm:$0xff]
    %v103 = vld [vmem:[%s1 + $0x1d8] sm:$0xff]
    %v104 = vld [vmem:[%s1 + $0x1e0] sm:$0xff]
    %v105 = vld [vmem:[%s1 + $0x1e8] sm:$0xff]
    %v106 = vld [vmem:[%s1 + $0x1f0] sm:$0xff]
    %v107 = vld [vmem:[%s1 + $0x1f8] sm:$0xff]
    %v108 = vld [vmem:[%s1 + $0x200] sm:$0xff]
    %v109 = vld [vmem:[%s1 + $0x208] sm:$0xff]
    %v110 = vld [vmem:[%s1 + $0x210] sm:$0xff]
    %v111 = vld [vmem:[%s1 + $0x218] sm:$0xff]
    %v112 = vld [vmem:[%s1 + $0x220] sm:$0xff]
    %v113 = vld [vmem:[%s1 + $0x228] sm:$0xff]
    %v114 = vld [vmem:[%s1 + $0x230] sm:$0xff]
    %v115 = vld [vmem:[%s1 + $0x238] sm:$0xff]
    %v116 = vld [vmem:[%s1 + $0x240] sm:$0xff]
    %v117 = vld [vmem:[%s1 + $0x248] sm:$0xff]
    %v118 = vld [vmem:[%s1 + $0x250] sm:$0xff]
    %v119 = vld [vmem:[%s1 + $0x258] sm:$0xff]
    %v120 = vld [vmem:[%s1 + $0x260] sm:$0xff]
    %v121 = vld [vmem:[%s1 + $0x268] sm:$0xff]
    %v122 = vld [vmem:[%s1 + $0x270] sm:$0xff]
    %v123 = vld [vmem:[%s1 + $0x278] sm:$0xff]
    %v124 = vld [vmem:[%s1 + $0x280] sm:$0xff]
    %v125 = vld [vmem:[%s1 + $0x288] sm:$0xff]
    %v126 = vld [vmem:[%s1 + $0x290] sm:$0xff]
    %v127 = vld [vmem:[%s1 + $0x298] sm:$0xff]
    %v128 = vld [vmem:[%s1 + $0x2a0] sm:$0xff]
    %v129 = vld [vmem:[%s1 + $0x2a8] sm:$0xff]
    %v130 = vld [vmem:[%s1 + $0x2b0] sm:$0xff]
    %v131 = vld [vmem:[%s1 + $0x2b8] sm:$0xff]
    %v132 = vld [vmem:[%s1 + $0x2c0] sm:$0xff]
    %v133 = vld [vmem:[%s1 + $0x2c8] sm:$0xff]
    %v134 = vld [vmem:[%s1 + $0x2d0] sm:$0xff]
    %v135 = vld [vmem:[%s1 + $0x2d8] sm:$0xff]
    %v136 = vld [vmem:[%s1 + $0x2e0] sm:$0xff]
    %v137 = vld [vmem:[%s1 + $0x2e8] sm:$0xff]
    %v138 = vld [vmem:[%s1 + $0x2f0] sm:$0xff]
    %v139 = vld [vmem:[%s1 + $0x2f8] sm:$0xff]
    %v140 = vld [vmem:[%s1 + $0x300] sm:$0xff]
    %v141 = vld [vmem:[%s1 + $0x308] sm:$0xff]
    %v142 = vld [vmem:[%s1 + $0x310] sm:$0xff]
    %v143 = vld [vmem:[%s1 + $0x318] sm:$0xff]
    %v144 = vld [vmem:[%s1 + $0x320] sm:$0xff]
    %v145 = vld [vmem:[%s1 + $0x328] sm:$0xff]
    %v146 = vld [vmem:[%s1 + $0x330] sm:$0xff]
    %v147 = vld [vmem:[%s1 + $0x338] sm:$0xff]
    %v148 = vld [vmem:[%s1 + $0x340] sm:$0xff]
    %v149 = vld [vmem:[%s1 + $0x348] sm:$0xff]
    %v150 = vld [vmem:[%s1 + $0x350] sm:$0xff]
    %v151 = vld [vmem:[%s1 + $0x358] sm:$0xff]
    %v152 = vld [vmem:[%s1 + $0x360] sm:$0xff]
    %v153 = vld [vmem:[%s1 + $0x368] sm:$0xff]
    %v154 = vld [vmem:[%s1 + $0x370] sm:$0xff]
    %v155 = vld [vmem:[%s1 + $0x378] sm:$0xff]
    %v156 = vld [vmem:[%s1 + $0x380] sm:$0xff]
    %v157 = vld [vmem:[%s1 + $0x388] sm:$0xff]
    %v158 = vld [vmem:[%s1 + $0x390] sm:$0xff]
    %v159 = vld [vmem:[%s1 + $0x398] sm:$0xff]
    %v160 = vld [vmem:[%s1 + $0x3a0] sm:$0xff]
    %v161 = vld [vmem:[%s1 + $0x3a8] sm:$0xff]
    %v162 = vld [vmem:[%s1 + $0x3b0] sm:$0xff]
    %v163 = vld [vmem:[%s1 + $0x3b8] sm:$0xff]
    %v164 = vld [vmem:[%s1 + $0x3c0] sm:$0xff]
    %v165 = vld [vmem:[%s1 + $0x3c8] sm:$0xff]
    %v166 = vld [vmem:[%s1 + $0x3d0] sm:$0xff]
    %v167 = vld [vmem:[%s1 + $0x3d8] sm:$0xff]
    %v168 = vld [vmem:[%s1 + $0x3e0] sm:$0xff]
    %v169 = vld [vmem:[%s1 + $0x3e8] sm:$0xff]
    %v170 = vld [vmem:[%s1 + $0x3f0] sm:$0xff]
    %v171 = vld [vmem:[%s1 + $0x3f8] sm:$0xff]
    %v172 = vld [vmem:[%s1 + $0x400] sm:$0xff]
    %v173 = vld [vmem:[%s1 + $0x408] sm:$0xff]
    %v174 = vld [vmem:[%s1 + $0x410] sm:$0xff]
    %v175 = vld [vmem:[%s1 + $0x418] sm:$0xff]
    %v176 = vld [vmem:[%s1 + $0x420] sm:$0xff]
    %v177 = vld [vmem:[%s1 + $0x428] sm:$0xff]
    %v178 = vld [vmem:[%s1 + $0x430] sm:$0xff]
    %v179 = vld [vmem:[%s1 + $0x438] sm:$0xff]
    %v180 = vld [vmem:[%s1 + $0x440] sm:$0xff]
    %v181 = vld [vmem:[%s1 + $0x448] sm:$0xff]
    %v182 = vld [vmem:[%s1 + $0x450] sm:$0xff]
    %v183 = vld [vmem:[%s1 + $0x458] sm:$0xff]
    %v184 = vld [vmem:[%s1 + $0x460] sm:$0xff]
    %v185 = vld [vmem:[%s1 + $0x468] sm:$0xff]
    %v186 = vld [vmem:[%s1 + $0x470] sm:$0xff]
    %v187 = vld [vmem:[%s1 + $0x478] sm:$0xff]
    %v188 = vld [vmem:[%s1 + $0x480] sm:$0xff]
    %v189 = vld [vmem:[%s1 + $0x488] sm:$0xff]
    %v190 = vld [vmem:[%s1 + $0x490] sm:$0xff]
    %v191 = vld [vmem:[%s1 + $0x498] sm:$0xff]
    %v192 = vld [vmem:[%s1 + $0x4a0] sm:$0xff]
    %v193 = vld [vmem:[%s1 + $0x4a8] sm:$0xff]
    %v194 = vld [vmem:[%s1 + $0x4b0] sm:$0xff]
    %v195 = vld [vmem:[%s1 + $0x4b8] sm:$0xff]
    %v196 = vld [vmem:[%s1 + $0x4c0] sm:$0xff]
    %v197 = vld [vmem:[%s1 + $0x4c8] sm:$0xff]
    %v198 = vld [vmem:[%s1 + $0x4d0] sm:$0xff]
    %v199 = vld [vmem:[%s1 + $0x4d8] sm:$0xff]
    %v200 = vld [vmem:[%s1 + $0x4e0] sm:$0xff]
    %v201 = vld [vmem:[%s1 + $0x4e8] sm:$0xff]
    %v202 = vld [vmem:[%s1 + $0x4f0] sm:$0xff]
    %v203 = vld [vmem:[%s1 + $0x4f8] sm:$0xff]
    %v204 = vld [vmem:[%s1 + $0x500] sm:$0xff]
    %v205 = vld [vmem:[%s1 + $0x508] sm:$0xff]
    %v206 = vld [vmem:[%s1 + $0x510] sm:$0xff]
    %v207 = vld [vmem:[%s1 + $0x518] sm:$0xff]
    %v208 = vld [vmem:[%s1 + $0x520] sm:$0xff]
    %v209 = vld [vmem:[%s1 + $0x528] sm:$0xff]
    %v210 = vld [vmem:[%s1 + $0x530] sm:$0xff]
    %v211 = vld [vmem:[%s1 + $0x538] sm:$0xff]
    %v212 = vld [vmem:[%s1 + $0x540] sm:$0xff]
    %v213 = vld [vmem:[%s1 + $0x548] sm:$0xff]
    %v214 = vld [vmem:[%s1 + $0x550] sm:$0xff]
    %v215 = vld [vmem:[%s1 + $0x558] sm:$0xff]
    %v216 = vld [vmem:[%s1 + $0x560] sm:$0xff]
    %v217 = vld [vmem:[%s1 + $0x568] sm:$0xff]
    %v218 = vld [vmem:[%s1 + $0x570] sm:$0xff]
    %v219 = vld [vmem:[%s1 + $0x578] sm:$0xff]
    %v220 = vld [vmem:[%s1 + $0x580] sm:$0xff]
    %v221 = vld [vmem:[%s1 + $0x588] sm:$0xff]
    %v222 = vld [vmem:[%s1 + $0x590] sm:$0xff]
    %v223 = vld [vmem:[%s1 + $0x598] sm:$0xff]
    %v224 = vld [vmem:[%s1 + $0x5a0] sm:$0xff]
    %v225 = vld [vmem:[%s1 + $0x5a8] sm:$0xff]
    %v226 = vld [vmem:[%s1 + $0x5b0] sm:$0xff]
    %v227 = vld [vmem:[%s1 + $0x5b8] sm:$0xff]
    %v228 = vld [vmem:[%s1 + $0x5c0] sm:$0xff]
    %v229 = vld [vmem:[%s1 + $0x5c8] sm:$0xff]
    %v230 = vld [vmem:[%s1 + $0x5d0] sm:$0xff]
    %v231 = vld [vmem:[%s1 + $0x5d8] sm:$0xff]
    %v232 = vld [vmem:[%s1 + $0x5e0] sm:$0xff]
    %v233 = vld [vmem:[%s1 + $0x5e8] sm:$0xff]
    %v234 = vld [vmem:[%s1 + $0x5f0] sm:$0xff]
    %v235 = vld [vmem:[%s1 + $0x5f8] sm:$0xff]
    %v236 = vld [vmem:[%s1 + $0x600] sm:$0xff]
    %v237 = vld [vmem:[%s1 + $0x608] sm:$0xff]
    %v238 = vld [vmem:[%s1 + $0x610] sm:$0xff]
    %v239 = vld [vmem:[%s1 + $0x618] sm:$0xff]
    %v240 = vld [vmem:[%s2] sm:$0xf]
    %v242 = vlaneseq
    %v243 = vshrl.u32 %v242, 7
    %v244 = vsub.s32 0, %v243
    %v245 = vrot.slane %v240, %v244
    %v246 = vlaneseq
    %v247 = vshrl.u32 %v246, 7
    %v248 = vsub.s32 1, %v247
    %v249 = vrot.slane %v240, %v248
    %v250 = vlaneseq
    %v251 = vshrl.u32 %v250, 7
    %v252 = vsub.s32 2, %v251
    %v253 = vrot.slane %v240, %v252
    %v254 = vlaneseq
    %v255 = vshrl.u32 %v254, 7
    %v256 = vsub.s32 3, %v255
    %v257 = vrot.slane %v240, %v256
    %v458 = vunpack.c.l.b16 %v44
    %v459 = vunpack.c.h.b16 %v44
    %v460 = vunpack.c.l.b16 %v45
    %v461 = vunpack.c.h.b16 %v45
    %v462 = vunpack.c.l.b16 %v46
    %v463 = vunpack.c.h.b16 %v46
    %v464 = vunpack.c.l.b16 %v47
    %v465 = vunpack.c.h.b16 %v47
    %v466 = vunpack.c.l.b16 %v48
    %v467 = vunpack.c.h.b16 %v48
    %v468 = vunpack.c.l.b16 %v49
    %v469 = vunpack.c.h.b16 %v49
    %v470 = vunpack.c.l.b16 %v50
    %v471 = vunpack.c.h.b16 %v50
    %v472 = vunpack.c.l.b16 %v51
    %v473 = vunpack.c.h.b16 %v51
    %v474 = vunpack.c.l.b16 %v52
    %v475 = vunpack.c.h.b16 %v52
    %v476 = vunpack.c.l.b16 %v53
    %v477 = vunpack.c.h.b16 %v53
    %v478 = vunpack.c.l.b16 %v54
    %v479 = vunpack.c.h.b16 %v54
    %v480 = vunpack.c.l.b16 %v55
    %v481 = vunpack.c.h.b16 %v55
    %v482 = vunpack.c.l.b16 %v56
    %v483 = vunpack.c.h.b16 %v56
    %v484 = vunpack.c.l.b16 %v57
    %v485 = vunpack.c.h.b16 %v57
    %v486 = vunpack.c.l.b16 %v58
    %v487 = vunpack.c.h.b16 %v58
    %v488 = vunpack.c.l.b16 %v59
    %v489 = vunpack.c.h.b16 %v59
    %v490 = vunpack.c.l.b16 %v60
    %v491 = vunpack.c.h.b16 %v60
    %v492 = vunpack.c.l.b16 %v61
    %v493 = vunpack.c.h.b16 %v61
    %v494 = vunpack.c.l.b16 %v62
    %v495 = vunpack.c.h.b16 %v62
    %v496 = vunpack.c.l.b16 %v63
    %v497 = vunpack.c.h.b16 %v63
    %v498 = vunpack.c.l.b16 %v64
    %v499 = vunpack.c.h.b16 %v64
    %v500 = vunpack.c.l.b16 %v65
    %v501 = vunpack.c.h.b16 %v65
    %v502 = vunpack.c.l.b16 %v66
    %v503 = vunpack.c.h.b16 %v66
    %v504 = vunpack.c.l.b16 %v67
    %v505 = vunpack.c.h.b16 %v67
    %v506 = vunpack.c.l.b16 %v68
    %v507 = vunpack.c.h.b16 %v68
    %v508 = vunpack.c.l.b16 %v69
    %v509 = vunpack.c.h.b16 %v69
    %v510 = vunpack.c.l.b16 %v70
    %v511 = vunpack.c.h.b16 %v70
    %v512 = vunpack.c.l.b16 %v71
    %v513 = vunpack.c.h.b16 %v71
    %v514 = vunpack.c.l.b16 %v72
    %v515 = vunpack.c.h.b16 %v72
    %v516 = vunpack.c.l.b16 %v73
    %v517 = vunpack.c.h.b16 %v73
    %v518 = vunpack.c.l.b16 %v74
    %v519 = vunpack.c.h.b16 %v74
    %v520 = vunpack.c.l.b16 %v75
    %v521 = vunpack.c.h.b16 %v75
    %v522 = vunpack.c.l.b16 %v76
    %v523 = vunpack.c.h.b16 %v76
    %v524 = vunpack.c.l.b16 %v77
    %v525 = vunpack.c.h.b16 %v77
    %v526 = vunpack.c.l.b16 %v78
    %v527 = vunpack.c.h.b16 %v78
    %v528 = vunpack.c.l.b16 %v79
    %v529 = vunpack.c.h.b16 %v79
    %v530 = vunpack.c.l.b16 %v80
    %v531 = vunpack.c.h.b16 %v80
    %v532 = vunpack.c.l.b16 %v81
    %v533 = vunpack.c.h.b16 %v81
    %v534 = vunpack.c.l.b16 %v82
    %v535 = vunpack.c.h.b16 %v82
    %v536 = vunpack.c.l.b16 %v83
    %v537 = vunpack.c.h.b16 %v83
    %v538 = vunpack.c.l.b16 %v84
    %v539 = vunpack.c.h.b16 %v84
    %v540 = vunpack.c.l.b16 %v85
    %v541 = vunpack.c.h.b16 %v85
    %v542 = vunpack.c.l.b16 %v86
    %v543 = vunpack.c.h.b16 %v86
    %v544 = vunpack.c.l.b16 %v87
    %v545 = vunpack.c.h.b16 %v87
    %v546 = vunpack.c.l.b16 %v88
    %v547 = vunpack.c.h.b16 %v88
    %v548 = vunpack.c.l.b16 %v89
    %v549 = vunpack.c.h.b16 %v89
    %v550 = vunpack.c.l.b16 %v90
    %v551 = vunpack.c.h.b16 %v90
    %v552 = vunpack.c.l.b16 %v91
    %v553 = vunpack.c.h.b16 %v91
    %v554 = vunpack.c.l.b16 %v92
    %v555 = vunpack.c.h.b16 %v92
    %v556 = vunpack.c.l.b16 %v93
    %v557 = vunpack.c.h.b16 %v93
    %v558 = vunpack.c.l.b16 %v94
    %v559 = vunpack.c.h.b16 %v94
    %v560 = vunpack.c.l.b16 %v95
    %v561 = vunpack.c.h.b16 %v95
    %v562 = vunpack.c.l.b16 %v96
    %v563 = vunpack.c.h.b16 %v96
    %v564 = vunpack.c.l.b16 %v97
    %v565 = vunpack.c.h.b16 %v97
    %v566 = vunpack.c.l.b16 %v98
    %v567 = vunpack.c.h.b16 %v98
    %v568 = vunpack.c.l.b16 %v99
    %v569 = vunpack.c.h.b16 %v99
    %v570 = vunpack.c.l.b16 %v100
    %v571 = vunpack.c.h.b16 %v100
    %v572 = vunpack.c.l.b16 %v101
    %v573 = vunpack.c.h.b16 %v101
    %v574 = vunpack.c.l.b16 %v102
    %v575 = vunpack.c.h.b16 %v102
    %v576 = vunpack.c.l.b16 %v103
    %v577 = vunpack.c.h.b16 %v103
    %v578 = vunpack.c.l.b16 %v104
    %v579 = vunpack.c.h.b16 %v104
    %v580 = vunpack.c.l.b16 %v105
    %v581 = vunpack.c.h.b16 %v105
    %v582 = vunpack.c.l.b16 %v106
    %v583 = vunpack.c.h.b16 %v106
    %v584 = vunpack.c.l.b16 %v107
    %v585 = vunpack.c.h.b16 %v107
    %v586 = vunpack.c.l.b16 %v108
    %v587 = vunpack.c.h.b16 %v108
    %v588 = vunpack.c.l.b16 %v109
    %v589 = vunpack.c.h.b16 %v109
    %v590 = vunpack.c.l.b16 %v110
    %v591 = vunpack.c.h.b16 %v110
    %v592 = vunpack.c.l.b16 %v111
    %v593 = vunpack.c.h.b16 %v111
    %v594 = vunpack.c.l.b16 %v112
    %v595 = vunpack.c.h.b16 %v112
    %v596 = vunpack.c.l.b16 %v113
    %v597 = vunpack.c.h.b16 %v113
    %v598 = vunpack.c.l.b16 %v114
    %v599 = vunpack.c.h.b16 %v114
    %v600 = vunpack.c.l.b16 %v115
    %v601 = vunpack.c.h.b16 %v115
    %v602 = vunpack.c.l.b16 %v116
    %v603 = vunpack.c.h.b16 %v116
    %v604 = vunpack.c.l.b16 %v117
    %v605 = vunpack.c.h.b16 %v117
    %v606 = vunpack.c.l.b16 %v118
    %v607 = vunpack.c.h.b16 %v118
    %v608 = vunpack.c.l.b16 %v119
    %v609 = vunpack.c.h.b16 %v119
    %v610 = vunpack.c.l.b16 %v120
    %v611 = vunpack.c.h.b16 %v120
    %v612 = vunpack.c.l.b16 %v121
    %v613 = vunpack.c.h.b16 %v121
    %v614 = vunpack.c.l.b16 %v122
    %v615 = vunpack.c.h.b16 %v122
    %v616 = vunpack.c.l.b16 %v123
    %v617 = vunpack.c.h.b16 %v123
    %v618 = vunpack.c.l.b16 %v124
    %v619 = vunpack.c.h.b16 %v124
    %v620 = vunpack.c.l.b16 %v125
    %v621 = vunpack.c.h.b16 %v125
    %v622 = vunpack.c.l.b16 %v126
    %v623 = vunpack.c.h.b16 %v126
    %v624 = vunpack.c.l.b16 %v127
    %v625 = vunpack.c.h.b16 %v127
    %v626 = vunpack.c.l.b16 %v128
    %v627 = vunpack.c.h.b16 %v128
    %v628 = vunpack.c.l.b16 %v129
    %v629 = vunpack.c.h.b16 %v129
    %v630 = vunpack.c.l.b16 %v130
    %v631 = vunpack.c.h.b16 %v130
    %v632 = vunpack.c.l.b16 %v131
    %v633 = vunpack.c.h.b16 %v131
    %v634 = vunpack.c.l.b16 %v132
    %v635 = vunpack.c.h.b16 %v132
    %v636 = vunpack.c.l.b16 %v133
    %v637 = vunpack.c.h.b16 %v133
    %v638 = vunpack.c.l.b16 %v134
    %v639 = vunpack.c.h.b16 %v134
    %v640 = vunpack.c.l.b16 %v135
    %v641 = vunpack.c.h.b16 %v135
    %v642 = vunpack.c.l.b16 %v136
    %v643 = vunpack.c.h.b16 %v136
    %v644 = vunpack.c.l.b16 %v137
    %v645 = vunpack.c.h.b16 %v137
    %v646 = vunpack.c.l.b16 %v138
    %v647 = vunpack.c.h.b16 %v138
    %v648 = vunpack.c.l.b16 %v139
    %v649 = vunpack.c.h.b16 %v139
    %v650 = vunpack.c.l.b16 %v140
    %v651 = vunpack.c.h.b16 %v140
    %v652 = vunpack.c.l.b16 %v141
    %v653 = vunpack.c.h.b16 %v141
    %v654 = vunpack.c.l.b16 %v142
    %v655 = vunpack.c.h.b16 %v142
    %v656 = vunpack.c.l.b16 %v143
    %v657 = vunpack.c.h.b16 %v143
    %v658 = vunpack.c.l.b16 %v144
    %v659 = vunpack.c.h.b16 %v144
    %v660 = vunpack.c.l.b16 %v145
    %v661 = vunpack.c.h.b16 %v145
    %v662 = vunpack.c.l.b16 %v146
    %v663 = vunpack.c.h.b16 %v146
    %v664 = vunpack.c.l.b16 %v147
    %v665 = vunpack.c.h.b16 %v147
    %v666 = vunpack.c.l.b16 %v148
    %v667 = vunpack.c.h.b16 %v148
    %v668 = vunpack.c.l.b16 %v149
    %v669 = vunpack.c.h.b16 %v149
    %v670 = vunpack.c.l.b16 %v150
    %v671 = vunpack.c.h.b16 %v150
    %v672 = vunpack.c.l.b16 %v151
    %v673 = vunpack.c.h.b16 %v151
    %v674 = vunpack.c.l.b16 %v152
    %v675 = vunpack.c.h.b16 %v152
    %v676 = vunpack.c.l.b16 %v153
    %v677 = vunpack.c.h.b16 %v153
    %v678 = vunpack.c.l.b16 %v154
    %v679 = vunpack.c.h.b16 %v154
    %v680 = vunpack.c.l.b16 %v155
    %v681 = vunpack.c.h.b16 %v155
    %v682 = vunpack.c.l.b16 %v156
    %v683 = vunpack.c.h.b16 %v156
    %v684 = vunpack.c.l.b16 %v157
    %v685 = vunpack.c.h.b16 %v157
    %v686 = vunpack.c.l.b16 %v158
    %v687 = vunpack.c.h.b16 %v158
    %v688 = vunpack.c.l.b16 %v159
    %v689 = vunpack.c.h.b16 %v159
    %v690 = vunpack.c.l.b16 %v160
    %v691 = vunpack.c.h.b16 %v160
    %v692 = vunpack.c.l.b16 %v161
    %v693 = vunpack.c.h.b16 %v161
    %v694 = vunpack.c.l.b16 %v162
    %v695 = vunpack.c.h.b16 %v162
    %v696 = vunpack.c.l.b16 %v163
    %v697 = vunpack.c.h.b16 %v163
    %v698 = vunpack.c.l.b16 %v164
    %v699 = vunpack.c.h.b16 %v164
    %v700 = vunpack.c.l.b16 %v165
    %v701 = vunpack.c.h.b16 %v165
    %v702 = vunpack.c.l.b16 %v166
    %v703 = vunpack.c.h.b16 %v166
    %v704 = vunpack.c.l.b16 %v167
    %v705 = vunpack.c.h.b16 %v167
    %v706 = vunpack.c.l.b16 %v168
    %v707 = vunpack.c.h.b16 %v168
    %v708 = vunpack.c.l.b16 %v169
    %v709 = vunpack.c.h.b16 %v169
    %v710 = vunpack.c.l.b16 %v170
    %v711 = vunpack.c.h.b16 %v170
    %v712 = vunpack.c.l.b16 %v171
    %v713 = vunpack.c.h.b16 %v171
    %v714 = vunpack.c.l.b16 %v172
    %v715 = vunpack.c.h.b16 %v172
    %v716 = vunpack.c.l.b16 %v173
    %v717 = vunpack.c.h.b16 %v173
    %v718 = vunpack.c.l.b16 %v174
    %v719 = vunpack.c.h.b16 %v174
    %v720 = vunpack.c.l.b16 %v175
    %v721 = vunpack.c.h.b16 %v175
    %v722 = vunpack.c.l.b16 %v176
    %v723 = vunpack.c.h.b16 %v176
    %v724 = vunpack.c.l.b16 %v177
    %v725 = vunpack.c.h.b16 %v177
    %v726 = vunpack.c.l.b16 %v178
    %v727 = vunpack.c.h.b16 %v178
    %v728 = vunpack.c.l.b16 %v179
    %v729 = vunpack.c.h.b16 %v179
    %v730 = vunpack.c.l.b16 %v180
    %v731 = vunpack.c.h.b16 %v180
    %v732 = vunpack.c.l.b16 %v181
    %v733 = vunpack.c.h.b16 %v181
    %v734 = vunpack.c.l.b16 %v182
    %v735 = vunpack.c.h.b16 %v182
    %v736 = vunpack.c.l.b16 %v183
    %v737 = vunpack.c.h.b16 %v183
    %v738 = vunpack.c.l.b16 %v184
    %v739 = vunpack.c.h.b16 %v184
    %v740 = vunpack.c.l.b16 %v185
    %v741 = vunpack.c.h.b16 %v185
    %v742 = vunpack.c.l.b16 %v186
    %v743 = vunpack.c.h.b16 %v186
    %v744 = vunpack.c.l.b16 %v187
    %v745 = vunpack.c.h.b16 %v187
    %v746 = vunpack.c.l.b16 %v188
    %v747 = vunpack.c.h.b16 %v188
    %v748 = vunpack.c.l.b16 %v189
    %v749 = vunpack.c.h.b16 %v189
    %v750 = vunpack.c.l.b16 %v190
    %v751 = vunpack.c.h.b16 %v190
    %v752 = vunpack.c.l.b16 %v191
    %v753 = vunpack.c.h.b16 %v191
    %v754 = vunpack.c.l.b16 %v192
    %v755 = vunpack.c.h.b16 %v192
    %v756 = vunpack.c.l.b16 %v193
    %v757 = vunpack.c.h.b16 %v193
    %v758 = vunpack.c.l.b16 %v194
    %v759 = vunpack.c.h.b16 %v194
    %v760 = vunpack.c.l.b16 %v195
    %v761 = vunpack.c.h.b16 %v195
    %v762 = vunpack.c.l.b16 %v196
    %v763 = vunpack.c.h.b16 %v196
    %v764 = vunpack.c.l.b16 %v197
    %v765 = vunpack.c.h.b16 %v197
    %v766 = vunpack.c.l.b16 %v198
    %v767 = vunpack.c.h.b16 %v198
    %v768 = vunpack.c.l.b16 %v199
    %v769 = vunpack.c.h.b16 %v199
    %v770 = vunpack.c.l.b16 %v200
    %v771 = vunpack.c.h.b16 %v200
    %v772 = vunpack.c.l.b16 %v201
    %v773 = vunpack.c.h.b16 %v201
    %v774 = vunpack.c.l.b16 %v202
    %v775 = vunpack.c.h.b16 %v202
    %v776 = vunpack.c.l.b16 %v203
    %v777 = vunpack.c.h.b16 %v203
    %v778 = vunpack.c.l.b16 %v204
    %v779 = vunpack.c.h.b16 %v204
    %v780 = vunpack.c.l.b16 %v205
    %v781 = vunpack.c.h.b16 %v205
    %v782 = vunpack.c.l.b16 %v206
    %v783 = vunpack.c.h.b16 %v206
    %v784 = vunpack.c.l.b16 %v207
    %v785 = vunpack.c.h.b16 %v207
    %v786 = vunpack.c.l.b16 %v208
    %v787 = vunpack.c.h.b16 %v208
    %v788 = vunpack.c.l.b16 %v209
    %v789 = vunpack.c.h.b16 %v209
    %v790 = vunpack.c.l.b16 %v210
    %v791 = vunpack.c.h.b16 %v210
    %v792 = vunpack.c.l.b16 %v211
    %v793 = vunpack.c.h.b16 %v211
    %v794 = vunpack.c.l.b16 %v212
    %v795 = vunpack.c.h.b16 %v212
    %v796 = vunpack.c.l.b16 %v213
    %v797 = vunpack.c.h.b16 %v213
    %v798 = vunpack.c.l.b16 %v214
    %v799 = vunpack.c.h.b16 %v214
    %v800 = vunpack.c.l.b16 %v215
    %v801 = vunpack.c.h.b16 %v215
    %v802 = vunpack.c.l.b16 %v216
    %v803 = vunpack.c.h.b16 %v216
    %v804 = vunpack.c.l.b16 %v217
    %v805 = vunpack.c.h.b16 %v217
    %v806 = vunpack.c.l.b16 %v218
    %v807 = vunpack.c.h.b16 %v218
    %v808 = vunpack.c.l.b16 %v219
    %v809 = vunpack.c.h.b16 %v219
    %v810 = vunpack.c.l.b16 %v220
    %v811 = vunpack.c.h.b16 %v220
    %v812 = vunpack.c.l.b16 %v221
    %v813 = vunpack.c.h.b16 %v221
    %v814 = vunpack.c.l.b16 %v222
    %v815 = vunpack.c.h.b16 %v222
    %v816 = vunpack.c.l.b16 %v223
    %v817 = vunpack.c.h.b16 %v223
    %v818 = vunpack.c.l.b16 %v224
    %v819 = vunpack.c.h.b16 %v224
    %v820 = vunpack.c.l.b16 %v225
    %v821 = vunpack.c.h.b16 %v225
    %v822 = vunpack.c.l.b16 %v226
    %v823 = vunpack.c.h.b16 %v226
    %v824 = vunpack.c.l.b16 %v227
    %v825 = vunpack.c.h.b16 %v227
    %v826 = vunpack.c.l.b16 %v228
    %v827 = vunpack.c.h.b16 %v228
    %v828 = vunpack.c.l.b16 %v229
    %v829 = vunpack.c.h.b16 %v229
    %v830 = vunpack.c.l.b16 %v230
    %v831 = vunpack.c.h.b16 %v230
    %v832 = vunpack.c.l.b16 %v231
    %v833 = vunpack.c.h.b16 %v231
    %v834 = vunpack.c.l.b16 %v232
    %v835 = vunpack.c.h.b16 %v232
    %v836 = vunpack.c.l.b16 %v233
    %v837 = vunpack.c.h.b16 %v233
    %v838 = vunpack.c.l.b16 %v234
    %v839 = vunpack.c.h.b16 %v234
    %v840 = vunpack.c.l.b16 %v235
    %v841 = vunpack.c.h.b16 %v235
    %v842 = vunpack.c.l.b16 %v236
    %v843 = vunpack.c.h.b16 %v236
    %v844 = vunpack.c.l.b16 %v237
    %v845 = vunpack.c.h.b16 %v237
    %v846 = vunpack.c.l.b16 %v238
    %v847 = vunpack.c.h.b16 %v238
    %v848 = vunpack.c.l.b16 %v239
    %v849 = vunpack.c.h.b16 %v239
    %v850 = vpack.c.b16 %v462, %v458
    %v851 = vpack.c.b16 %v463, %v459
    %v852 = vpack.c.b16 %v464, %v460
    %v853 = vpack.c.b16 %v465, %v461
    %v854 = vpack.c.b16 %v470, %v466
    %v855 = vpack.c.b16 %v471, %v467
    %v856 = vpack.c.b16 %v472, %v468
    %v857 = vpack.c.b16 %v473, %v469
    %v858 = vpack.c.b16 %v478, %v474
    %v859 = vpack.c.b16 %v479, %v475
    %v860 = vpack.c.b16 %v480, %v476
    %v861 = vpack.c.b16 %v481, %v477
    %v862 = vpack.c.b16 %v486, %v482
    %v863 = vpack.c.b16 %v487, %v483
    %v864 = vpack.c.b16 %v488, %v484
    %v865 = vpack.c.b16 %v489, %v485
    %v866 = vpack.c.b16 %v494, %v490
    %v867 = vpack.c.b16 %v495, %v491
    %v868 = vpack.c.b16 %v496, %v492
    %v869 = vpack.c.b16 %v497, %v493
    %v870 = vpack.c.b16 %v502, %v498
    %v871 = vpack.c.b16 %v503, %v499
    %v872 = vpack.c.b16 %v504, %v500
    %v873 = vpack.c.b16 %v505, %v501
    %v874 = vpack.c.b16 %v510, %v506
    %v875 = vpack.c.b16 %v511, %v507
    %v876 = vpack.c.b16 %v512, %v508
    %v877 = vpack.c.b16 %v513, %v509
    %v878 = vpack.c.b16 %v518, %v514
    %v879 = vpack.c.b16 %v519, %v515
    %v880 = vpack.c.b16 %v520, %v516
    %v881 = vpack.c.b16 %v521, %v517
    %v882 = vpack.c.b16 %v526, %v522
    %v883 = vpack.c.b16 %v527, %v523
    %v884 = vpack.c.b16 %v528, %v524
    %v885 = vpack.c.b16 %v529, %v525
    %v886 = vpack.c.b16 %v534, %v530
    %v887 = vpack.c.b16 %v535, %v531
    %v888 = vpack.c.b16 %v536, %v532
    %v889 = vpack.c.b16 %v537, %v533
    %v890 = vpack.c.b16 %v542, %v538
    %v891 = vpack.c.b16 %v543, %v539
    %v892 = vpack.c.b16 %v544, %v540
    %v893 = vpack.c.b16 %v545, %v541
    %v894 = vpack.c.b16 %v550, %v546
    %v895 = vpack.c.b16 %v551, %v547
    %v896 = vpack.c.b16 %v552, %v548
    %v897 = vpack.c.b16 %v553, %v549
    %v898 = vpack.c.b16 %v558, %v554
    %v899 = vpack.c.b16 %v559, %v555
    %v900 = vpack.c.b16 %v560, %v556
    %v901 = vpack.c.b16 %v561, %v557
    %v902 = vpack.c.b16 %v566, %v562
    %v903 = vpack.c.b16 %v567, %v563
    %v904 = vpack.c.b16 %v568, %v564
    %v905 = vpack.c.b16 %v569, %v565
    %v906 = vpack.c.b16 %v574, %v570
    %v907 = vpack.c.b16 %v575, %v571
    %v908 = vpack.c.b16 %v576, %v572
    %v909 = vpack.c.b16 %v577, %v573
    %v910 = vpack.c.b16 %v582, %v578
    %v911 = vpack.c.b16 %v583, %v579
    %v912 = vpack.c.b16 %v584, %v580
    %v913 = vpack.c.b16 %v585, %v581
    %v914 = vpack.c.b16 %v590, %v586
    %v915 = vpack.c.b16 %v591, %v587
    %v916 = vpack.c.b16 %v592, %v588
    %v917 = vpack.c.b16 %v593, %v589
    %v918 = vpack.c.b16 %v598, %v594
    %v919 = vpack.c.b16 %v599, %v595
    %v920 = vpack.c.b16 %v600, %v596
    %v921 = vpack.c.b16 %v601, %v597
    %v922 = vpack.c.b16 %v606, %v602
    %v923 = vpack.c.b16 %v607, %v603
    %v924 = vpack.c.b16 %v608, %v604
    %v925 = vpack.c.b16 %v609, %v605
    %v926 = vpack.c.b16 %v614, %v610
    %v927 = vpack.c.b16 %v615, %v611
    %v928 = vpack.c.b16 %v616, %v612
    %v929 = vpack.c.b16 %v617, %v613
    %v930 = vpack.c.b16 %v622, %v618
    %v931 = vpack.c.b16 %v623, %v619
    %v932 = vpack.c.b16 %v624, %v620
    %v933 = vpack.c.b16 %v625, %v621
    %v934 = vpack.c.b16 %v630, %v626
    %v935 = vpack.c.b16 %v631, %v627
    %v936 = vpack.c.b16 %v632, %v628
    %v937 = vpack.c.b16 %v633, %v629
    %v938 = vpack.c.b16 %v638, %v634
    %v939 = vpack.c.b16 %v639, %v635
    %v940 = vpack.c.b16 %v640, %v636
    %v941 = vpack.c.b16 %v641, %v637
    %v942 = vpack.c.b16 %v646, %v642
    %v943 = vpack.c.b16 %v647, %v643
    %v944 = vpack.c.b16 %v648, %v644
    %v945 = vpack.c.b16 %v649, %v645
    %v946 = vpack.c.b16 %v654, %v650
    %v947 = vpack.c.b16 %v655, %v651
    %v948 = vpack.c.b16 %v656, %v652
    %v949 = vpack.c.b16 %v657, %v653
    %v950 = vpack.c.b16 %v662, %v658
    %v951 = vpack.c.b16 %v663, %v659
    %v952 = vpack.c.b16 %v664, %v660
    %v953 = vpack.c.b16 %v665, %v661
    %v954 = vpack.c.b16 %v670, %v666
    %v955 = vpack.c.b16 %v671, %v667
    %v956 = vpack.c.b16 %v672, %v668
    %v957 = vpack.c.b16 %v673, %v669
    %v958 = vpack.c.b16 %v678, %v674
    %v959 = vpack.c.b16 %v679, %v675
    %v960 = vpack.c.b16 %v680, %v676
    %v961 = vpack.c.b16 %v681, %v677
    %v962 = vpack.c.b16 %v686, %v682
    %v963 = vpack.c.b16 %v687, %v683
    %v964 = vpack.c.b16 %v688, %v684
    %v965 = vpack.c.b16 %v689, %v685
    %v966 = vpack.c.b16 %v694, %v690
    %v967 = vpack.c.b16 %v695, %v691
    %v968 = vpack.c.b16 %v696, %v692
    %v969 = vpack.c.b16 %v697, %v693
    %v970 = vpack.c.b16 %v702, %v698
    %v971 = vpack.c.b16 %v703, %v699
    %v972 = vpack.c.b16 %v704, %v700
    %v973 = vpack.c.b16 %v705, %v701
    %v974 = vpack.c.b16 %v710, %v706
    %v975 = vpack.c.b16 %v711, %v707
    %v976 = vpack.c.b16 %v712, %v708
    %v977 = vpack.c.b16 %v713, %v709
    %v978 = vpack.c.b16 %v718, %v714
    %v979 = vpack.c.b16 %v719, %v715
    %v980 = vpack.c.b16 %v720, %v716
    %v981 = vpack.c.b16 %v721, %v717
    %v982 = vpack.c.b16 %v726, %v722
    %v983 = vpack.c.b16 %v727, %v723
    %v984 = vpack.c.b16 %v728, %v724
    %v985 = vpack.c.b16 %v729, %v725
    %v986 = vpack.c.b16 %v734, %v730
    %v987 = vpack.c.b16 %v735, %v731
    %v988 = vpack.c.b16 %v736, %v732
    %v989 = vpack.c.b16 %v737, %v733
    %v990 = vpack.c.b16 %v742, %v738
    %v991 = vpack.c.b16 %v743, %v739
    %v992 = vpack.c.b16 %v744, %v740
    %v993 = vpack.c.b16 %v745, %v741
    %v994 = vpack.c.b16 %v750, %v746
    %v995 = vpack.c.b16 %v751, %v747
    %v996 = vpack.c.b16 %v752, %v748
    %v997 = vpack.c.b16 %v753, %v749
    %v998 = vpack.c.b16 %v758, %v754
    %v999 = vpack.c.b16 %v759, %v755
    %v1000 = vpack.c.b16 %v760, %v756
    %v1001 = vpack.c.b16 %v761, %v757
    %v1002 = vpack.c.b16 %v766, %v762
    %v1003 = vpack.c.b16 %v767, %v763
    %v1004 = vpack.c.b16 %v768, %v764
    %v1005 = vpack.c.b16 %v769, %v765
    %v1006 = vpack.c.b16 %v774, %v770
    %v1007 = vpack.c.b16 %v775, %v771
    %v1008 = vpack.c.b16 %v776, %v772
    %v1009 = vpack.c.b16 %v777, %v773
    %v1010 = vpack.c.b16 %v782, %v778
    %v1011 = vpack.c.b16 %v783, %v779
    %v1012 = vpack.c.b16 %v784, %v780
    %v1013 = vpack.c.b16 %v785, %v781
    %v1014 = vpack.c.b16 %v790, %v786
    %v1015 = vpack.c.b16 %v791, %v787
    %v1016 = vpack.c.b16 %v792, %v788
    %v1017 = vpack.c.b16 %v793, %v789
    %v1018 = vpack.c.b16 %v798, %v794
    %v1019 = vpack.c.b16 %v799, %v795
    %v1020 = vpack.c.b16 %v800, %v796
    %v1021 = vpack.c.b16 %v801, %v797
    %v1022 = vpack.c.b16 %v806, %v802
    %v1023 = vpack.c.b16 %v807, %v803
    %v1024 = vpack.c.b16 %v808, %v804
    %v1025 = vpack.c.b16 %v809, %v805
    %v1026 = vpack.c.b16 %v814, %v810
    %v1027 = vpack.c.b16 %v815, %v811
    %v1028 = vpack.c.b16 %v816, %v812
    %v1029 = vpack.c.b16 %v817, %v813
    %v1030 = vpack.c.b16 %v822, %v818
    %v1031 = vpack.c.b16 %v823, %v819
    %v1032 = vpack.c.b16 %v824, %v820
    %v1033 = vpack.c.b16 %v825, %v821
    %v1034 = vpack.c.b16 %v830, %v826
    %v1035 = vpack.c.b16 %v831, %v827
    %v1036 = vpack.c.b16 %v832, %v828
    %v1037 = vpack.c.b16 %v833, %v829
    %v1038 = vpack.c.b16 %v838, %v834
    %v1039 = vpack.c.b16 %v839, %v835
    %v1040 = vpack.c.b16 %v840, %v836
    %v1041 = vpack.c.b16 %v841, %v837
    %v1042 = vpack.c.b16 %v846, %v842
    %v1043 = vpack.c.b16 %v847, %v843
    %v1044 = vpack.c.b16 %v848, %v844
    %v1045 = vpack.c.b16 %v849, %v845
    %vm1242 = vcmask 130048
    %v1244 = vsel %vm1242, %v43, 0
    %1246 = vmatprep.subr.bf16.mxu0 %v879
    %1247 = vmatpush1.bf16.msra.mxu0 %v878
    %1248 = vmatprep.subr.bf16.mxu0 %v875
    %1249 = vmatpush1.bf16.msra.mxu0 %v874
    %1250 = vmatprep.subr.bf16.mxu0 %v871
    %1251 = vmatpush1.bf16.msra.mxu0 %v870
    %1252 = vmatprep.subr.bf16.mxu0 %v867
    %1253 = vmatpush1.bf16.msra.mxu0 %v866
    %1254 = vmatprep.subr.bf16.mxu0 %v863
    %1255 = vmatpush1.bf16.msra.mxu0 %v862
    %1256 = vmatprep.subr.bf16.mxu0 %v859
    %1257 = vmatpush1.bf16.msra.mxu0 %v858
    %1258 = vmatprep.subr.bf16.mxu0 %v855
    %1259 = vmatpush1.bf16.msra.mxu0 %v854
    %1260 = vmatprep.subr.bf16.mxu0 %v851
    %1261 = vmatpush1.bf16.msra.mxu0 %v850
    %1262 = vmatprep.subr.bf16.mxu0 %v911
    %1263 = vmatpush2.bf16.msra.mxu0 %v910
    %1264 = vmatprep.subr.bf16.mxu0 %v907
    %1265 = vmatpush2.bf16.msra.mxu0 %v906
    %1266 = vmatprep.subr.bf16.mxu0 %v903
    %1267 = vmatpush2.bf16.msra.mxu0 %v902
    %1268 = vmatprep.subr.bf16.mxu0 %v899
    %1269 = vmatpush2.bf16.msra.mxu0 %v898
    %1270 = vmatprep.subr.bf16.mxu0 %v895
    %1271 = vmatpush2.bf16.msra.mxu0 %v894
    %1272 = vmatprep.subr.bf16.mxu0 %v891
    %1273 = vmatpush2.bf16.msra.mxu0 %v890
    %1274 = vmatprep.subr.bf16.mxu0 %v887
    %1275 = vmatpush2.bf16.msra.mxu0 %v886
    %1276 = vmatprep.subr.bf16.mxu0 %v883
    %1277 = vmatpush2.bf16.msra.mxu0 %v882
    %1278 = vmatprep.mubr.bf16.mxu0 %v38
    %1279 = vmatmul.mubr.bf16.gmra.mxu0 %v37
    %v1280 = vpop.f32.mrf.mxu0
    %v1281 = vadd.f32 %v245, %v1280
    %v1282 = vpop.f32.mrf.mxu0
    %v1283 = vadd.f32 %v249, %v1282
    %v1284 = vpop.f32.mrf.mxu0
    %v1285 = vpop.f32.mrf.mxu0
    %1286 = vdwg.mxu0
    %1287 = vmatprep.subr.bf16.mxu0 %v943
    %1288 = vmatpush1.bf16.msra.mxu0 %v942
    %1289 = vmatprep.subr.bf16.mxu0 %v939
    %1290 = vmatpush1.bf16.msra.mxu0 %v938
    %1291 = vmatprep.subr.bf16.mxu0 %v935
    %1292 = vmatpush1.bf16.msra.mxu0 %v934
    %1293 = vmatprep.subr.bf16.mxu0 %v931
    %1294 = vmatpush1.bf16.msra.mxu0 %v930
    %1295 = vmatprep.subr.bf16.mxu0 %v927
    %1296 = vmatpush1.bf16.msra.mxu0 %v926
    %1297 = vmatprep.subr.bf16.mxu0 %v923
    %1298 = vmatpush1.bf16.msra.mxu0 %v922
    %1299 = vmatprep.subr.bf16.mxu0 %v919
    %1300 = vmatpush1.bf16.msra.mxu0 %v918
    %1301 = vmatprep.subr.bf16.mxu0 %v915
    %1302 = vmatpush1.bf16.msra.mxu0 %v914
    %1303 = vmatprep.subr.bf16.mxu0 %v975
    %1304 = vmatpush2.bf16.msra.mxu0 %v974
    %1305 = vmatprep.subr.bf16.mxu0 %v971
    %1306 = vmatpush2.bf16.msra.mxu0 %v970
    %1307 = vmatprep.subr.bf16.mxu0 %v967
    %1308 = vmatpush2.bf16.msra.mxu0 %v966
    %1309 = vmatprep.subr.bf16.mxu0 %v963
    %1310 = vmatpush2.bf16.msra.mxu0 %v962
    %1311 = vmatprep.subr.bf16.mxu0 %v959
    %1312 = vmatpush2.bf16.msra.mxu0 %v958
    %1313 = vmatprep.subr.bf16.mxu0 %v955
    %1314 = vmatpush2.bf16.msra.mxu0 %v954
    %1315 = vmatprep.subr.bf16.mxu0 %v951
    %1316 = vmatpush2.bf16.msra.mxu0 %v950
    %1317 = vmatprep.subr.bf16.mxu0 %v947
    %1318 = vmatpush2.bf16.msra.mxu0 %v946
    %1319 = vmatprep.mubr.bf16.mxu0 %v40
    %1320 = vmatmul.mubr.bf16.gmra.mxu0 %v39
    %v1321 = vpop.f32.mrf.mxu0
    %v1322 = vadd.f32 %v1281, %v1321
    %v1323 = vpop.f32.mrf.mxu0
    %v1324 = vadd.f32 %v1283, %v1323
    %v1325 = vpop.f32.mrf.mxu0
    %v1326 = vpop.f32.mrf.mxu0
    %1327 = vdwg.mxu0
    %1328 = vmatprep.subr.bf16.mxu0 %v1007
    %1329 = vmatpush1.bf16.msra.mxu0 %v1006
    %1330 = vmatprep.subr.bf16.mxu0 %v1003
    %1331 = vmatpush1.bf16.msra.mxu0 %v1002
    %1332 = vmatprep.subr.bf16.mxu0 %v999
    %1333 = vmatpush1.bf16.msra.mxu0 %v998
    %1334 = vmatprep.subr.bf16.mxu0 %v995
    %1335 = vmatpush1.bf16.msra.mxu0 %v994
    %1336 = vmatprep.subr.bf16.mxu0 %v991
    %1337 = vmatpush1.bf16.msra.mxu0 %v990
    %1338 = vmatprep.subr.bf16.mxu0 %v987
    %1339 = vmatpush1.bf16.msra.mxu0 %v986
    %1340 = vmatprep.subr.bf16.mxu0 %v983
    %1341 = vmatpush1.bf16.msra.mxu0 %v982
    %1342 = vmatprep.subr.bf16.mxu0 %v979
    %1343 = vmatpush1.bf16.msra.mxu0 %v978
    %1344 = vmatprep.subr.bf16.mxu0 %v1039
    %1345 = vmatpush2.bf16.msra.mxu0 %v1038
    %1346 = vmatprep.subr.bf16.mxu0 %v1035
    %1347 = vmatpush2.bf16.msra.mxu0 %v1034
    %1348 = vmatprep.subr.bf16.mxu0 %v1031
    %1349 = vmatpush2.bf16.msra.mxu0 %v1030
    %1350 = vmatprep.subr.bf16.mxu0 %v1027
    %1351 = vmatpush2.bf16.msra.mxu0 %v1026
    %1352 = vmatprep.subr.bf16.mxu0 %v1023
    %1353 = vmatpush2.bf16.msra.mxu0 %v1022
    %1354 = vmatprep.subr.bf16.mxu0 %v1019
    %1355 = vmatpush2.bf16.msra.mxu0 %v1018
    %1356 = vmatprep.subr.bf16.mxu0 %v1015
    %1357 = vmatpush2.bf16.msra.mxu0 %v1014
    %1358 = vmatprep.subr.bf16.mxu0 %v1011
    %1359 = vmatpush2.bf16.msra.mxu0 %v1010
    %1360 = vmatprep.mubr.bf16.mxu0 %v42
    %1361 = vmatmul.mubr.bf16.gmra.mxu0 %v41
    %v1362 = vpop.f32.mrf.mxu0
    %v1363 = vadd.f32 %v1322, %v1362
    %v1364 = vpop.f32.mrf.mxu0
    %v1365 = vadd.f32 %v1324, %v1364
    %v1366 = vpop.f32.mrf.mxu0
    %v1367 = vpop.f32.mrf.mxu0
    %1368 = vdwg.mxu0
    %1369 = vmatprep.subr.bf16.mxu0 0
    %1370 = vmatpush1.bf16.msra.mxu0 0
    %1371 = vmatprep.subr.bf16.mxu0 0
    %1372 = vmatpush1.bf16.msra.mxu0 0
    %1373 = vmatprep.subr.bf16.mxu0 0
    %1374 = vmatpush1.bf16.msra.mxu0 0
    %1375 = vmatprep.subr.bf16.mxu0 0
    %1376 = vmatpush1.bf16.msra.mxu0 0
    %1377 = vmatprep.subr.bf16.mxu0 0
    %1378 = vmatpush1.bf16.msra.mxu0 0
    %1379 = vmatprep.subr.bf16.mxu0 0
    %1380 = vmatpush1.bf16.msra.mxu0 0
    %1381 = vmatprep.subr.bf16.mxu0 0
    %1382 = vmatpush1.bf16.msra.mxu0 0
    %1383 = vmatprep.subr.bf16.mxu0 %v1043
    %1384 = vmatpush1.bf16.msra.mxu0 %v1042
    %1385 = vmatprep.subr.bf16.mxu0 0
    %1386 = vmatpush2.bf16.msra.mxu0 0
    %1387 = vmatprep.subr.bf16.mxu0 0
    %1388 = vmatpush2.bf16.msra.mxu0 0
    %1389 = vmatprep.subr.bf16.mxu0 0
    %1390 = vmatpush2.bf16.msra.mxu0 0
    %1391 = vmatprep.subr.bf16.mxu0 0
    %1392 = vmatpush2.bf16.msra.mxu0 0
    %1393 = vmatprep.subr.bf16.mxu0 0
    %1394 = vmatpush2.bf16.msra.mxu0 0
    %1395 = vmatprep.subr.bf16.mxu0 0
    %1396 = vmatpush2.bf16.msra.mxu0 0
    %1397 = vmatprep.subr.bf16.mxu0 0
    %1398 = vmatpush2.bf16.msra.mxu0 0
    %1399 = vmatprep.subr.bf16.mxu0 0
    %1400 = vmatpush2.bf16.msra.mxu0 0
    %1401 = vmatprep.mubr.bf16.mxu0 0
    %1402 = vmatmul.mubr.bf16.gmra.mxu0 %v1244
    %v1403 = vpop.f32.mrf.mxu0
    %v1404 = vadd.f32 %v1363, %v1403
    %v1405 = vpop.f32.mrf.mxu0
    %v1406 = vadd.f32 %v1365, %v1405
    %v1407 = vpop.f32.mrf.mxu0
    %v1408 = vpop.f32.mrf.mxu0
    %1409 = vdwg.mxu0
    %1410 = vmatprep.subr.bf16.mxu0 %v881
    %1411 = vmatpush1.bf16.msra.mxu0 %v880
    %1412 = vmatprep.subr.bf16.mxu0 %v877
    %1413 = vmatpush1.bf16.msra.mxu0 %v876
    %1414 = vmatprep.subr.bf16.mxu0 %v873
    %1415 = vmatpush1.bf16.msra.mxu0 %v872
    %1416 = vmatprep.subr.bf16.mxu0 %v869
    %1417 = vmatpush1.bf16.msra.mxu0 %v868
    %1418 = vmatprep.subr.bf16.mxu0 %v865
    %1419 = vmatpush1.bf16.msra.mxu0 %v864
    %1420 = vmatprep.subr.bf16.mxu0 %v861
    %1421 = vmatpush1.bf16.msra.mxu0 %v860
    %1422 = vmatprep.subr.bf16.mxu0 %v857
    %1423 = vmatpush1.bf16.msra.mxu0 %v856
    %1424 = vmatprep.subr.bf16.mxu0 %v853
    %1425 = vmatpush1.bf16.msra.mxu0 %v852
    %1426 = vmatprep.subr.bf16.mxu0 %v913
    %1427 = vmatpush2.bf16.msra.mxu0 %v912
    %1428 = vmatprep.subr.bf16.mxu0 %v909
    %1429 = vmatpush2.bf16.msra.mxu0 %v908
    %1430 = vmatprep.subr.bf16.mxu0 %v905
    %1431 = vmatpush2.bf16.msra.mxu0 %v904
    %1432 = vmatprep.subr.bf16.mxu0 %v901
    %1433 = vmatpush2.bf16.msra.mxu0 %v900
    %1434 = vmatprep.subr.bf16.mxu0 %v897
    %1435 = vmatpush2.bf16.msra.mxu0 %v896
    %1436 = vmatprep.subr.bf16.mxu0 %v893
    %1437 = vmatpush2.bf16.msra.mxu0 %v892
    %1438 = vmatprep.subr.bf16.mxu0 %v889
    %1439 = vmatpush2.bf16.msra.mxu0 %v888
    %1440 = vmatprep.subr.bf16.mxu0 %v885
    %1441 = vmatpush2.bf16.msra.mxu0 %v884
    %1442 = vmatprep.mubr.bf16.mxu0 %v38
    %1443 = vmatmul.mubr.bf16.gmra.mxu0 %v37
    %v1444 = vpop.f32.mrf.mxu0
    %v1445 = vadd.f32 %v253, %v1444
    %v1446 = vpop.f32.mrf.mxu0
    %v1447 = vadd.f32 %v257, %v1446
    %v1448 = vpop.f32.mrf.mxu0
    %v1449 = vpop.f32.mrf.mxu0
    %1450 = vdwg.mxu0
    %1451 = vmatprep.subr.bf16.mxu0 %v945
    %1452 = vmatpush1.bf16.msra.mxu0 %v944
    %1453 = vmatprep.subr.bf16.mxu0 %v941
    %1454 = vmatpush1.bf16.msra.mxu0 %v940
    %1455 = vmatprep.subr.bf16.mxu0 %v937
    %1456 = vmatpush1.bf16.msra.mxu0 %v936
    %1457 = vmatprep.subr.bf16.mxu0 %v933
    %1458 = vmatpush1.bf16.msra.mxu0 %v932
    %1459 = vmatprep.subr.bf16.mxu0 %v929
    %1460 = vmatpush1.bf16.msra.mxu0 %v928
    %1461 = vmatprep.subr.bf16.mxu0 %v925
    %1462 = vmatpush1.bf16.msra.mxu0 %v924
    %1463 = vmatprep.subr.bf16.mxu0 %v921
    %1464 = vmatpush1.bf16.msra.mxu0 %v920
    %1465 = vmatprep.subr.bf16.mxu0 %v917
    %1466 = vmatpush1.bf16.msra.mxu0 %v916
    %1467 = vmatprep.subr.bf16.mxu0 %v977
    %1468 = vmatpush2.bf16.msra.mxu0 %v976
    %1469 = vmatprep.subr.bf16.mxu0 %v973
    %1470 = vmatpush2.bf16.msra.mxu0 %v972
    %1471 = vmatprep.subr.bf16.mxu0 %v969
    %1472 = vmatpush2.bf16.msra.mxu0 %v968
    %1473 = vmatprep.subr.bf16.mxu0 %v965
    %1474 = vmatpush2.bf16.msra.mxu0 %v964
    %1475 = vmatprep.subr.bf16.mxu0 %v961
    %1476 = vmatpush2.bf16.msra.mxu0 %v960
    %1477 = vmatprep.subr.bf16.mxu0 %v957
    %1478 = vmatpush2.bf16.msra.mxu0 %v956
    %1479 = vmatprep.subr.bf16.mxu0 %v953
    %1480 = vmatpush2.bf16.msra.mxu0 %v952
    %1481 = vmatprep.subr.bf16.mxu0 %v949
    %1482 = vmatpush2.bf16.msra.mxu0 %v948
    %1483 = vmatprep.mubr.bf16.mxu0 %v40
    %1484 = vmatmul.mubr.bf16.gmra.mxu0 %v39
    %v1485 = vpop.f32.mrf.mxu0
    %v1486 = vadd.f32 %v1445, %v1485
    %v1487 = vpop.f32.mrf.mxu0
    %v1488 = vadd.f32 %v1447, %v1487
    %v1489 = vpop.f32.mrf.mxu0
    %v1490 = vpop.f32.mrf.mxu0
    %1491 = vdwg.mxu0
    %1492 = vmatprep.subr.bf16.mxu0 %v1009
    %1493 = vmatpush1.bf16.msra.mxu0 %v1008
    %1494 = vmatprep.subr.bf16.mxu0 %v1005
    %1495 = vmatpush1.bf16.msra.mxu0 %v1004
    %1496 = vmatprep.subr.bf16.mxu0 %v1001
    %1497 = vmatpush1.bf16.msra.mxu0 %v1000
    %1498 = vmatprep.subr.bf16.mxu0 %v997
    %1499 = vmatpush1.bf16.msra.mxu0 %v996
    %1500 = vmatprep.subr.bf16.mxu0 %v993
    %1501 = vmatpush1.bf16.msra.mxu0 %v992
    %1502 = vmatprep.subr.bf16.mxu0 %v989
    %1503 = vmatpush1.bf16.msra.mxu0 %v988
    %1504 = vmatprep.subr.bf16.mxu0 %v985
    %1505 = vmatpush1.bf16.msra.mxu0 %v984
    %1506 = vmatprep.subr.bf16.mxu0 %v981
    %1507 = vmatpush1.bf16.msra.mxu0 %v980
    %1508 = vmatprep.subr.bf16.mxu0 %v1041
    %1509 = vmatpush2.bf16.msra.mxu0 %v1040
    %1510 = vmatprep.subr.bf16.mxu0 %v1037
    %1511 = vmatpush2.bf16.msra.mxu0 %v1036
    %1512 = vmatprep.subr.bf16.mxu0 %v1033
    %1513 = vmatpush2.bf16.msra.mxu0 %v1032
    %1514 = vmatprep.subr.bf16.mxu0 %v1029
    %1515 = vmatpush2.bf16.msra.mxu0 %v1028
    %1516 = vmatprep.subr.bf16.mxu0 %v1025
    %1517 = vmatpush2.bf16.msra.mxu0 %v1024
    %1518 = vmatprep.subr.bf16.mxu0 %v1021
    %1519 = vmatpush2.bf16.msra.mxu0 %v1020
    %1520 = vmatprep.subr.bf16.mxu0 %v1017
    %1521 = vmatpush2.bf16.msra.mxu0 %v1016
    %1522 = vmatprep.subr.bf16.mxu0 %v1013
    %1523 = vmatpush2.bf16.msra.mxu0 %v1012
    %1524 = vmatprep.mubr.bf16.mxu0 %v42
    %1525 = vmatmul.mubr.bf16.gmra.mxu0 %v41
    %v1526 = vpop.f32.mrf.mxu0
    %v1527 = vadd.f32 %v1486, %v1526
    %v1528 = vpop.f32.mrf.mxu0
    %v1529 = vadd.f32 %v1488, %v1528
    %v1530 = vpop.f32.mrf.mxu0
    %v1531 = vpop.f32.mrf.mxu0
    %1532 = vdwg.mxu0
    %1533 = vmatprep.subr.bf16.mxu0 0
    %1534 = vmatpush1.bf16.msra.mxu0 0
    %1535 = vmatprep.subr.bf16.mxu0 0
    %1536 = vmatpush1.bf16.msra.mxu0 0
    %1537 = vmatprep.subr.bf16.mxu0 0
    %1538 = vmatpush1.bf16.msra.mxu0 0
    %1539 = vmatprep.subr.bf16.mxu0 0
    %1540 = vmatpush1.bf16.msra.mxu0 0
    %1541 = vmatprep.subr.bf16.mxu0 0
    %1542 = vmatpush1.bf16.msra.mxu0 0
    %1543 = vmatprep.subr.bf16.mxu0 0
    %1544 = vmatpush1.bf16.msra.mxu0 0
    %1545 = vmatprep.subr.bf16.mxu0 0
    %1546 = vmatpush1.bf16.msra.mxu0 0
    %1547 = vmatprep.subr.bf16.mxu0 %v1045
    %1548 = vmatpush1.bf16.msra.mxu0 %v1044
    %1549 = vmatprep.subr.bf16.mxu0 0
    %1550 = vmatpush2.bf16.msra.mxu0 0
    %1551 = vmatprep.subr.bf16.mxu0 0
    %1552 = vmatpush2.bf16.msra.mxu0 0
    %1553 = vmatprep.subr.bf16.mxu0 0
    %1554 = vmatpush2.bf16.msra.mxu0 0
    %1555 = vmatprep.subr.bf16.mxu0 0
    %1556 = vmatpush2.bf16.msra.mxu0 0
    %1557 = vmatprep.subr.bf16.mxu0 0
    %1558 = vmatpush2.bf16.msra.mxu0 0
    %1559 = vmatprep.subr.bf16.mxu0 0
    %1560 = vmatpush2.bf16.msra.mxu0 0
    %1561 = vmatprep.subr.bf16.mxu0 0
    %1562 = vmatpush2.bf16.msra.mxu0 0
    %1563 = vmatprep.subr.bf16.mxu0 0
    %1564 = vmatpush2.bf16.msra.mxu0 0
    %1565 = vmatprep.mubr.bf16.mxu0 0
    %1566 = vmatmul.mubr.bf16.gmra.mxu0 %v1244
    %v1567 = vpop.f32.mrf.mxu0
    %v1568 = vadd.f32 %v1527, %v1567
    %v1569 = vpop.f32.mrf.mxu0
    %v1570 = vadd.f32 %v1529, %v1569
    %v1571 = vpop.f32.mrf.mxu0
    %v1572 = vpop.f32.mrf.mxu0
    %1573 = vdwg.mxu0
    %v1574 = vmul.f32 %v1404, 0.2
    %v1575 = vmul.f32 %v1406, 0.2
    %v1576 = vmul.f32 %v1568, 0.2
    %v1577 = vmul.f32 %v1570, 0.2
    %v1578 = vmax.f32 %v1404, %v1574
    %v1579 = vmax.f32 %v1406, %v1575
    %v1580 = vmax.f32 %v1568, %v1576
    %v1581 = vmax.f32 %v1570, %v1577
    %v1582 = vpack.c.bf16 %v1578, %v1578
    %v1583 = vpack.c.bf16 %v1579, %v1579
    %v1584 = vpack.c.bf16 %v1580, %v1580
    %v1585 = vpack.c.bf16 %v1581, %v1581
    %v1586 = vld [vmem:[%s3] sm:$0xff]
    %v1587 = vld [vmem:[%s3 + $0x8] sm:$0xff]
    %v1588 = vld [vmem:[%s3 + $0x10] sm:$0xff]
    %v1589 = vld [vmem:[%s3 + $0x18] sm:$0xff]
    %v1590 = vld [vmem:[%s3 + $0x20] sm:$0xff]
    %v1591 = vld [vmem:[%s3 + $0x28] sm:$0xff]
    %v1592 = vld [vmem:[%s3 + $0x30] sm:$0xff]
    %v1593 = vld [vmem:[%s3 + $0x38] sm:$0xff]
    %v1594 = vld [vmem:[%s3 + $0x40] sm:$0xff]
    %v1595 = vld [vmem:[%s3 + $0x48] sm:$0xff]
    %v1596 = vld [vmem:[%s3 + $0x50] sm:$0xff]
    %v1597 = vld [vmem:[%s3 + $0x58] sm:$0xff]
    %v1598 = vld [vmem:[%s3 + $0x60] sm:$0xff]
    %v1599 = vld [vmem:[%s3 + $0x68] sm:$0xff]
    %v1600 = vld [vmem:[%s3 + $0x70] sm:$0xff]
    %v1601 = vld [vmem:[%s3 + $0x78] sm:$0xff]
    %v1602 = vld [vmem:[%s3 + $0x80] sm:$0xff]
    %v1603 = vld [vmem:[%s3 + $0x88] sm:$0xff]
    %v1604 = vld [vmem:[%s3 + $0x90] sm:$0xff]
    %v1605 = vld [vmem:[%s3 + $0x98] sm:$0xff]
    %v1606 = vld [vmem:[%s3 + $0xa0] sm:$0xff]
    %v1607 = vld [vmem:[%s3 + $0xa8] sm:$0xff]
    %v1608 = vld [vmem:[%s3 + $0xb0] sm:$0xff]
    %v1609 = vld [vmem:[%s3 + $0xb8] sm:$0xff]
    %v1610 = vld [vmem:[%s3 + $0xc0] sm:$0xff]
    %v1611 = vld [vmem:[%s3 + $0xc8] sm:$0xff]
    %v1612 = vld [vmem:[%s3 + $0xd0] sm:$0xff]
    %v1613 = vld [vmem:[%s3 + $0xd8] sm:$0xff]
    %v1614 = vld [vmem:[%s3 + $0xe0] sm:$0xff]
    %v1615 = vld [vmem:[%s3 + $0xe8] sm:$0xff]
    %v1616 = vld [vmem:[%s3 + $0xf0] sm:$0xff]
    %v1617 = vld [vmem:[%s3 + $0xf8] sm:$0xff]
    %v1618 = vld [vmem:[%s3 + $0x100] sm:$0xff]
    %v1619 = vld [vmem:[%s3 + $0x108] sm:$0xff]
    %v1620 = vld [vmem:[%s3 + $0x110] sm:$0xff]
    %v1621 = vld [vmem:[%s3 + $0x118] sm:$0xff]
    %v1622 = vld [vmem:[%s3 + $0x120] sm:$0xff]
    %v1623 = vld [vmem:[%s3 + $0x128] sm:$0xff]
    %v1624 = vld [vmem:[%s3 + $0x130] sm:$0xff]
    %v1625 = vld [vmem:[%s3 + $0x138] sm:$0xff]
    %v1626 = vld [vmem:[%s3 + $0x140] sm:$0xff]
    %v1627 = vld [vmem:[%s3 + $0x148] sm:$0xff]
    %v1628 = vld [vmem:[%s3 + $0x150] sm:$0xff]
    %v1629 = vld [vmem:[%s3 + $0x158] sm:$0xff]
    %v1630 = vld [vmem:[%s3 + $0x160] sm:$0xff]
    %v1631 = vld [vmem:[%s3 + $0x168] sm:$0xff]
    %v1632 = vld [vmem:[%s3 + $0x170] sm:$0xff]
    %v1633 = vld [vmem:[%s3 + $0x178] sm:$0xff]
    %v1634 = vld [vmem:[%s3 + $0x180] sm:$0xff]
    %v1635 = vld [vmem:[%s3 + $0x188] sm:$0xff]
    %v1636 = vld [vmem:[%s3 + $0x190] sm:$0xff]
    %v1637 = vld [vmem:[%s3 + $0x198] sm:$0xff]
    %v1638 = vld [vmem:[%s3 + $0x1a0] sm:$0xff]
    %v1639 = vld [vmem:[%s3 + $0x1a8] sm:$0xff]
    %v1640 = vld [vmem:[%s3 + $0x1b0] sm:$0xff]
    %v1641 = vld [vmem:[%s3 + $0x1b8] sm:$0xff]
    %v1642 = vld [vmem:[%s3 + $0x1c0] sm:$0xff]
    %v1643 = vld [vmem:[%s3 + $0x1c8] sm:$0xff]
    %v1644 = vld [vmem:[%s3 + $0x1d0] sm:$0xff]
    %v1645 = vld [vmem:[%s3 + $0x1d8] sm:$0xff]
    %v1646 = vld [vmem:[%s3 + $0x1e0] sm:$0xff]
    %v1647 = vld [vmem:[%s3 + $0x1e8] sm:$0xff]
    %v1648 = vld [vmem:[%s3 + $0x1f0] sm:$0xff]
    %v1649 = vld [vmem:[%s3 + $0x1f8] sm:$0xff]
    %v1650 = vld [vmem:[%s4] sm:$0x3]
    %v1652 = vlaneseq
    %v1653 = vshrl.u32 %v1652, 7
    %v1654 = vsub.s32 0, %v1653
    %v1655 = vrot.slane %v1650, %v1654
    %v1656 = vlaneseq
    %v1657 = vshrl.u32 %v1656, 7
    %v1658 = vsub.s32 1, %v1657
    %v1659 = vrot.slane %v1650, %v1658
    %v1726 = vunpack.c.l.b16 %v1586
    %v1727 = vunpack.c.h.b16 %v1586
    %v1728 = vunpack.c.l.b16 %v1587
    %v1729 = vunpack.c.h.b16 %v1587
    %v1730 = vunpack.c.l.b16 %v1588
    %v1731 = vunpack.c.h.b16 %v1588
    %v1732 = vunpack.c.l.b16 %v1589
    %v1733 = vunpack.c.h.b16 %v1589
    %v1734 = vunpack.c.l.b16 %v1590
    %v1735 = vunpack.c.h.b16 %v1590
    %v1736 = vunpack.c.l.b16 %v1591
    %v1737 = vunpack.c.h.b16 %v1591
    %v1738 = vunpack.c.l.b16 %v1592
    %v1739 = vunpack.c.h.b16 %v1592
    %v1740 = vunpack.c.l.b16 %v1593
    %v1741 = vunpack.c.h.b16 %v1593
    %v1742 = vunpack.c.l.b16 %v1594
    %v1743 = vunpack.c.h.b16 %v1594
    %v1744 = vunpack.c.l.b16 %v1595
    %v1745 = vunpack.c.h.b16 %v1595
    %v1746 = vunpack.c.l.b16 %v1596
    %v1747 = vunpack.c.h.b16 %v1596
    %v1748 = vunpack.c.l.b16 %v1597
    %v1749 = vunpack.c.h.b16 %v1597
    %v1750 = vunpack.c.l.b16 %v1598
    %v1751 = vunpack.c.h.b16 %v1598
    %v1752 = vunpack.c.l.b16 %v1599
    %v1753 = vunpack.c.h.b16 %v1599
    %v1754 = vunpack.c.l.b16 %v1600
    %v1755 = vunpack.c.h.b16 %v1600
    %v1756 = vunpack.c.l.b16 %v1601
    %v1757 = vunpack.c.h.b16 %v1601
    %v1758 = vunpack.c.l.b16 %v1602
    %v1759 = vunpack.c.h.b16 %v1602
    %v1760 = vunpack.c.l.b16 %v1603
    %v1761 = vunpack.c.h.b16 %v1603
    %v1762 = vunpack.c.l.b16 %v1604
    %v1763 = vunpack.c.h.b16 %v1604
    %v1764 = vunpack.c.l.b16 %v1605
    %v1765 = vunpack.c.h.b16 %v1605
    %v1766 = vunpack.c.l.b16 %v1606
    %v1767 = vunpack.c.h.b16 %v1606
    %v1768 = vunpack.c.l.b16 %v1607
    %v1769 = vunpack.c.h.b16 %v1607
    %v1770 = vunpack.c.l.b16 %v1608
    %v1771 = vunpack.c.h.b16 %v1608
    %v1772 = vunpack.c.l.b16 %v1609
    %v1773 = vunpack.c.h.b16 %v1609
    %v1774 = vunpack.c.l.b16 %v1610
    %v1775 = vunpack.c.h.b16 %v1610
    %v1776 = vunpack.c.l.b16 %v1611
    %v1777 = vunpack.c.h.b16 %v1611
    %v1778 = vunpack.c.l.b16 %v1612
    %v1779 = vunpack.c.h.b16 %v1612
    %v1780 = vunpack.c.l.b16 %v1613
    %v1781 = vunpack.c.h.b16 %v1613
    %v1782 = vunpack.c.l.b16 %v1614
    %v1783 = vunpack.c.h.b16 %v1614
    %v1784 = vunpack.c.l.b16 %v1615
    %v1785 = vunpack.c.h.b16 %v1615
    %v1786 = vunpack.c.l.b16 %v1616
    %v1787 = vunpack.c.h.b16 %v1616
    %v1788 = vunpack.c.l.b16 %v1617
    %v1789 = vunpack.c.h.b16 %v1617
    %v1790 = vunpack.c.l.b16 %v1618
    %v1791 = vunpack.c.h.b16 %v1618
    %v1792 = vunpack.c.l.b16 %v1619
    %v1793 = vunpack.c.h.b16 %v1619
    %v1794 = vunpack.c.l.b16 %v1620
    %v1795 = vunpack.c.h.b16 %v1620
    %v1796 = vunpack.c.l.b16 %v1621
    %v1797 = vunpack.c.h.b16 %v1621
    %v1798 = vunpack.c.l.b16 %v1622
    %v1799 = vunpack.c.h.b16 %v1622
    %v1800 = vunpack.c.l.b16 %v1623
    %v1801 = vunpack.c.h.b16 %v1623
    %v1802 = vunpack.c.l.b16 %v1624
    %v1803 = vunpack.c.h.b16 %v1624
    %v1804 = vunpack.c.l.b16 %v1625
    %v1805 = vunpack.c.h.b16 %v1625
    %v1806 = vunpack.c.l.b16 %v1626
    %v1807 = vunpack.c.h.b16 %v1626
    %v1808 = vunpack.c.l.b16 %v1627
    %v1809 = vunpack.c.h.b16 %v1627
    %v1810 = vunpack.c.l.b16 %v1628
    %v1811 = vunpack.c.h.b16 %v1628
    %v1812 = vunpack.c.l.b16 %v1629
    %v1813 = vunpack.c.h.b16 %v1629
    %v1814 = vunpack.c.l.b16 %v1630
    %v1815 = vunpack.c.h.b16 %v1630
    %v1816 = vunpack.c.l.b16 %v1631
    %v1817 = vunpack.c.h.b16 %v1631
    %v1818 = vunpack.c.l.b16 %v1632
    %v1819 = vunpack.c.h.b16 %v1632
    %v1820 = vunpack.c.l.b16 %v1633
    %v1821 = vunpack.c.h.b16 %v1633
    %v1822 = vunpack.c.l.b16 %v1634
    %v1823 = vunpack.c.h.b16 %v1634
    %v1824 = vunpack.c.l.b16 %v1635
    %v1825 = vunpack.c.h.b16 %v1635
    %v1826 = vunpack.c.l.b16 %v1636
    %v1827 = vunpack.c.h.b16 %v1636
    %v1828 = vunpack.c.l.b16 %v1637
    %v1829 = vunpack.c.h.b16 %v1637
    %v1830 = vunpack.c.l.b16 %v1638
    %v1831 = vunpack.c.h.b16 %v1638
    %v1832 = vunpack.c.l.b16 %v1639
    %v1833 = vunpack.c.h.b16 %v1639
    %v1834 = vunpack.c.l.b16 %v1640
    %v1835 = vunpack.c.h.b16 %v1640
    %v1836 = vunpack.c.l.b16 %v1641
    %v1837 = vunpack.c.h.b16 %v1641
    %v1838 = vunpack.c.l.b16 %v1642
    %v1839 = vunpack.c.h.b16 %v1642
    %v1840 = vunpack.c.l.b16 %v1643
    %v1841 = vunpack.c.h.b16 %v1643
    %v1842 = vunpack.c.l.b16 %v1644
    %v1843 = vunpack.c.h.b16 %v1644
    %v1844 = vunpack.c.l.b16 %v1645
    %v1845 = vunpack.c.h.b16 %v1645
    %v1846 = vunpack.c.l.b16 %v1646
    %v1847 = vunpack.c.h.b16 %v1646
    %v1848 = vunpack.c.l.b16 %v1647
    %v1849 = vunpack.c.h.b16 %v1647
    %v1850 = vunpack.c.l.b16 %v1648
    %v1851 = vunpack.c.h.b16 %v1648
    %v1852 = vunpack.c.l.b16 %v1649
    %v1853 = vunpack.c.h.b16 %v1649
    %v1854 = vpack.c.b16 %v1728, %v1726
    %v1855 = vpack.c.b16 %v1729, %v1727
    %v1856 = vpack.c.b16 %v1732, %v1730
    %v1857 = vpack.c.b16 %v1733, %v1731
    %v1858 = vpack.c.b16 %v1736, %v1734
    %v1859 = vpack.c.b16 %v1737, %v1735
    %v1860 = vpack.c.b16 %v1740, %v1738
    %v1861 = vpack.c.b16 %v1741, %v1739
    %v1862 = vpack.c.b16 %v1744, %v1742
    %v1863 = vpack.c.b16 %v1745, %v1743
    %v1864 = vpack.c.b16 %v1748, %v1746
    %v1865 = vpack.c.b16 %v1749, %v1747
    %v1866 = vpack.c.b16 %v1752, %v1750
    %v1867 = vpack.c.b16 %v1753, %v1751
    %v1868 = vpack.c.b16 %v1756, %v1754
    %v1869 = vpack.c.b16 %v1757, %v1755
    %v1870 = vpack.c.b16 %v1760, %v1758
    %v1871 = vpack.c.b16 %v1761, %v1759
    %v1872 = vpack.c.b16 %v1764, %v1762
    %v1873 = vpack.c.b16 %v1765, %v1763
    %v1874 = vpack.c.b16 %v1768, %v1766
    %v1875 = vpack.c.b16 %v1769, %v1767
    %v1876 = vpack.c.b16 %v1772, %v1770
    %v1877 = vpack.c.b16 %v1773, %v1771
    %v1878 = vpack.c.b16 %v1776, %v1774
    %v1879 = vpack.c.b16 %v1777, %v1775
    %v1880 = vpack.c.b16 %v1780, %v1778
    %v1881 = vpack.c.b16 %v1781, %v1779
    %v1882 = vpack.c.b16 %v1784, %v1782
    %v1883 = vpack.c.b16 %v1785, %v1783
    %v1884 = vpack.c.b16 %v1788, %v1786
    %v1885 = vpack.c.b16 %v1789, %v1787
    %v1886 = vpack.c.b16 %v1792, %v1790
    %v1887 = vpack.c.b16 %v1793, %v1791
    %v1888 = vpack.c.b16 %v1796, %v1794
    %v1889 = vpack.c.b16 %v1797, %v1795
    %v1890 = vpack.c.b16 %v1800, %v1798
    %v1891 = vpack.c.b16 %v1801, %v1799
    %v1892 = vpack.c.b16 %v1804, %v1802
    %v1893 = vpack.c.b16 %v1805, %v1803
    %v1894 = vpack.c.b16 %v1808, %v1806
    %v1895 = vpack.c.b16 %v1809, %v1807
    %v1896 = vpack.c.b16 %v1812, %v1810
    %v1897 = vpack.c.b16 %v1813, %v1811
    %v1898 = vpack.c.b16 %v1816, %v1814
    %v1899 = vpack.c.b16 %v1817, %v1815
    %v1900 = vpack.c.b16 %v1820, %v1818
    %v1901 = vpack.c.b16 %v1821, %v1819
    %v1902 = vpack.c.b16 %v1824, %v1822
    %v1903 = vpack.c.b16 %v1825, %v1823
    %v1904 = vpack.c.b16 %v1828, %v1826
    %v1905 = vpack.c.b16 %v1829, %v1827
    %v1906 = vpack.c.b16 %v1832, %v1830
    %v1907 = vpack.c.b16 %v1833, %v1831
    %v1908 = vpack.c.b16 %v1836, %v1834
    %v1909 = vpack.c.b16 %v1837, %v1835
    %v1910 = vpack.c.b16 %v1840, %v1838
    %v1911 = vpack.c.b16 %v1841, %v1839
    %v1912 = vpack.c.b16 %v1844, %v1842
    %v1913 = vpack.c.b16 %v1845, %v1843
    %v1914 = vpack.c.b16 %v1848, %v1846
    %v1915 = vpack.c.b16 %v1849, %v1847
    %v1916 = vpack.c.b16 %v1852, %v1850
    %v1917 = vpack.c.b16 %v1853, %v1851
    %1982 = vmatprep.subr.bf16.mxu0 %v1869
    %1983 = vmatpush1.bf16.msra.mxu0 %v1868
    %1984 = vmatprep.subr.bf16.mxu0 %v1867
    %1985 = vmatpush1.bf16.msra.mxu0 %v1866
    %1986 = vmatprep.subr.bf16.mxu0 %v1865
    %1987 = vmatpush1.bf16.msra.mxu0 %v1864
    %1988 = vmatprep.subr.bf16.mxu0 %v1863
    %1989 = vmatpush1.bf16.msra.mxu0 %v1862
    %1990 = vmatprep.subr.bf16.mxu0 %v1861
    %1991 = vmatpush1.bf16.msra.mxu0 %v1860
    %1992 = vmatprep.subr.bf16.mxu0 %v1859
    %1993 = vmatpush1.bf16.msra.mxu0 %v1858
    %1994 = vmatprep.subr.bf16.mxu0 %v1857
    %1995 = vmatpush1.bf16.msra.mxu0 %v1856
    %1996 = vmatprep.subr.bf16.mxu0 %v1855
    %1997 = vmatpush1.bf16.msra.mxu0 %v1854
    %1998 = vmatprep.subr.bf16.mxu0 %v1885
    %1999 = vmatpush2.bf16.msra.mxu0 %v1884
    %2000 = vmatprep.subr.bf16.mxu0 %v1883
    %2001 = vmatpush2.bf16.msra.mxu0 %v1882
    %2002 = vmatprep.subr.bf16.mxu0 %v1881
    %2003 = vmatpush2.bf16.msra.mxu0 %v1880
    %2004 = vmatprep.subr.bf16.mxu0 %v1879
    %2005 = vmatpush2.bf16.msra.mxu0 %v1878
    %2006 = vmatprep.subr.bf16.mxu0 %v1877
    %2007 = vmatpush2.bf16.msra.mxu0 %v1876
    %2008 = vmatprep.subr.bf16.mxu0 %v1875
    %2009 = vmatpush2.bf16.msra.mxu0 %v1874
    %2010 = vmatprep.subr.bf16.mxu0 %v1873
    %2011 = vmatpush2.bf16.msra.mxu0 %v1872
    %2012 = vmatprep.subr.bf16.mxu0 %v1871
    %2013 = vmatpush2.bf16.msra.mxu0 %v1870
    %2014 = vmatprep.mubr.bf16.mxu0 %v1583
    %2015 = vmatmul.mubr.bf16.gmra.mxu0 %v1582
    %v2016 = vpop.f32.mrf.mxu0
    %v2017 = vadd.f32 %v1655, %v2016
    %v2018 = vpop.f32.mrf.mxu0
    %v2019 = vadd.f32 %v1659, %v2018
    %v2020 = vpop.f32.mrf.mxu0
    %v2021 = vpop.f32.mrf.mxu0
    %2022 = vdwg.mxu0
    %2023 = vmatprep.subr.bf16.mxu0 %v1901
    %2024 = vmatpush1.bf16.msra.mxu0 %v1900
    %2025 = vmatprep.subr.bf16.mxu0 %v1899
    %2026 = vmatpush1.bf16.msra.mxu0 %v1898
    %2027 = vmatprep.subr.bf16.mxu0 %v1897
    %2028 = vmatpush1.bf16.msra.mxu0 %v1896
    %2029 = vmatprep.subr.bf16.mxu0 %v1895
    %2030 = vmatpush1.bf16.msra.mxu0 %v1894
    %2031 = vmatprep.subr.bf16.mxu0 %v1893
    %2032 = vmatpush1.bf16.msra.mxu0 %v1892
    %2033 = vmatprep.subr.bf16.mxu0 %v1891
    %2034 = vmatpush1.bf16.msra.mxu0 %v1890
    %2035 = vmatprep.subr.bf16.mxu0 %v1889
    %2036 = vmatpush1.bf16.msra.mxu0 %v1888
    %2037 = vmatprep.subr.bf16.mxu0 %v1887
    %2038 = vmatpush1.bf16.msra.mxu0 %v1886
    %2039 = vmatprep.subr.bf16.mxu0 %v1917
    %2040 = vmatpush2.bf16.msra.mxu0 %v1916
    %2041 = vmatprep.subr.bf16.mxu0 %v1915
    %2042 = vmatpush2.bf16.msra.mxu0 %v1914
    %2043 = vmatprep.subr.bf16.mxu0 %v1913
    %2044 = vmatpush2.bf16.msra.mxu0 %v1912
    %2045 = vmatprep.subr.bf16.mxu0 %v1911
    %2046 = vmatpush2.bf16.msra.mxu0 %v1910
    %2047 = vmatprep.subr.bf16.mxu0 %v1909
    %2048 = vmatpush2.bf16.msra.mxu0 %v1908
    %2049 = vmatprep.subr.bf16.mxu0 %v1907
    %2050 = vmatpush2.bf16.msra.mxu0 %v1906
    %2051 = vmatprep.subr.bf16.mxu0 %v1905
    %2052 = vmatpush2.bf16.msra.mxu0 %v1904
    %2053 = vmatprep.subr.bf16.mxu0 %v1903
    %2054 = vmatpush2.bf16.msra.mxu0 %v1902
    %2055 = vmatprep.mubr.bf16.mxu0 %v1585
    %2056 = vmatmul.mubr.bf16.gmra.mxu0 %v1584
    %v2057 = vpop.f32.mrf.mxu0
    %v2058 = vadd.f32 %v2017, %v2057
    %v2059 = vpop.f32.mrf.mxu0
    %v2060 = vadd.f32 %v2019, %v2059
    %v2061 = vpop.f32.mrf.mxu0
    %v2062 = vpop.f32.mrf.mxu0
    %2063 = vdwg.mxu0
    %v2064 = vmul.f32 %v2058, 0.2
    %v2065 = vmul.f32 %v2060, 0.2
    %v2066 = vmax.f32 %v2058, %v2064
    %v2067 = vmax.f32 %v2060, %v2065
    %v2068 = vld [vmem:[%s5] sm:$0x3]
    %v2069 = vld [vmem:[#allocation2] sm:$0x1]
    %2071 = vset.pattern.permute.xlu0 0
    %2072 = vperm.xlu0 %2071, %v2069
    %v2073 = vpop.permute.xlu0 %2072
    %v2075 = vlaneseq
    %v2076 = vshrl.u32 %v2075, 7
    %v2077 = vsub.s32 0, %v2076
    %v2078 = vrot.slane %v2073, %v2077
    %v2080 = vlaneseq
    %v2081 = vshrl.u32 %v2080, 7
    %v2082 = vsub.s32 0, %v2081
    %v2083 = vrot.slane %v2068, %v2082
    %v2084 = vlaneseq
    %v2085 = vshrl.u32 %v2084, 7
    %v2086 = vsub.s32 1, %v2085
    %v2087 = vrot.slane %v2068, %v2086
    %2090 = vmatprep.subr.mxu0 0.0
    %2091 = vmatpush1.xpose.msra.mxu0 0.0
    %2092 = vmatprep.subr.mxu0 0.0
    %2093 = vmatpush1.xpose.msra.mxu0 0.0
    %2094 = vmatprep.subr.mxu0 0.0
    %2095 = vmatpush1.xpose.msra.mxu0 0.0
    %2096 = vmatprep.subr.mxu0 0.0
    %2097 = vmatpush1.xpose.msra.mxu0 0.0
    %2098 = vmatprep.subr.mxu0 0.0
    %2099 = vmatpush1.xpose.msra.mxu0 0.0
    %2100 = vmatprep.subr.mxu0 0.0
    %2101 = vmatpush1.xpose.msra.mxu0 0.0
    %2102 = vmatprep.subr.mxu0 0.0
    %2103 = vmatpush1.xpose.msra.mxu0 0.0
    %2104 = vmatprep.subr.mxu0 0.0
    %2105 = vmatpush1.xpose.msra.mxu0 0.0
    %2106 = vmatprep.subr.mxu0 0.0
    %2107 = vmatpush1.xpose.msra.mxu0 0.0
    %2108 = vmatprep.subr.mxu0 0.0
    %2109 = vmatpush1.xpose.msra.mxu0 0.0
    %2110 = vmatprep.subr.mxu0 0.0
    %2111 = vmatpush1.xpose.msra.mxu0 0.0
    %2112 = vmatprep.subr.mxu0 0.0
    %2113 = vmatpush1.xpose.msra.mxu0 0.0
    %2114 = vmatprep.subr.mxu0 0.0
    %2115 = vmatpush1.xpose.msra.mxu0 0.0
    %2116 = vmatprep.subr.mxu0 0.0
    %2117 = vmatpush1.xpose.msra.mxu0 0.0
    %2118 = vmatprep.subr.mxu0 0.0
    %2119 = vmatpush1.xpose.msra.mxu0 0.0
    %2120 = vmatprep.subr.mxu0 %v2067
    %2121 = vmatpush1.xpose.msra.mxu0 %v2066
    %2122 = vmatprep.subr.mxu0 0.0
    %2123 = vmatpush2.xpose.msra.mxu0 0.0
    %2124 = vmatprep.subr.mxu0 0.0
    %2125 = vmatpush2.xpose.msra.mxu0 0.0
    %2126 = vmatprep.subr.mxu0 0.0
    %2127 = vmatpush2.xpose.msra.mxu0 0.0
    %2128 = vmatprep.subr.mxu0 0.0
    %2129 = vmatpush2.xpose.msra.mxu0 0.0
    %2130 = vmatprep.subr.mxu0 0.0
    %2131 = vmatpush2.xpose.msra.mxu0 0.0
    %2132 = vmatprep.subr.mxu0 0.0
    %2133 = vmatpush2.xpose.msra.mxu0 0.0
    %2134 = vmatprep.subr.mxu0 0.0
    %2135 = vmatpush2.xpose.msra.mxu0 0.0
    %2136 = vmatprep.subr.mxu0 0.0
    %2137 = vmatpush2.xpose.msra.mxu0 0.0
    %2138 = vmatprep.subr.mxu0 0.0
    %2139 = vmatpush2.xpose.msra.mxu0 0.0
    %2140 = vmatprep.subr.mxu0 0.0
    %2141 = vmatpush2.xpose.msra.mxu0 0.0
    %2142 = vmatprep.subr.mxu0 0.0
    %2143 = vmatpush2.xpose.msra.mxu0 0.0
    %2144 = vmatprep.subr.mxu0 0.0
    %2145 = vmatpush2.xpose.msra.mxu0 0.0
    %2146 = vmatprep.subr.mxu0 0.0
    %2147 = vmatpush2.xpose.msra.mxu0 0.0
    %2148 = vmatprep.subr.mxu0 0.0
    %2149 = vmatpush2.xpose.msra.mxu0 0.0
    %2150 = vmatprep.subr.mxu0 0.0
    %2151 = vmatpush2.xpose.msra.mxu0 0.0
    %2152 = vmatprep.subr.mxu0 0.0
    %2153 = vmatpush2.xpose.msra.mxu0 0.0
    %2154 = vmatprep.mubr.f32.mxu0 %v2087
    %2155 = vmatmul.mubr.f32.gmra.mxu0 %v2083
    %v2156 = vpop.f32.mrf.mxu0
    %v2157 = vadd.f32 %v2078, %v2156
    %v2158 = vpop.f32.mrf.mxu0
    %2159 = vdwg.mxu0
    %vm2160 = vcmask 57344
    %2161 = vst.msk [vmem:[#allocation3] sm:$0x1] %vm2160, %v2157
    // Predicated region
    $region30: #{discriminator_forward.1} parent=1 // pred_check
      _
    $region31: #{discriminator_forward.1} parent=1 // pred_check_branch
      %2163 = sbr.rel (0) target = $region33
    $region32: #{discriminator_forward.1} parent=1 // pred_region
      %s2165 = ssub.s32 16, 16
      %2166 = vsyncadd [#allocation4], %s2165
      %s2168 = sshll.u32 [#allocation3], 4
      %s2169 = int_to_ptr.vmem [resolvable:$true] %s2168
      %2171 = dma.vmem_to_hbm [thread:$0]  %s2169, 16, %s7, [#allocation4]
    $region33: #{discriminator_forward.1} parent=1 // pred_fallthru
      _
    // Predicated region
    $region34: #{discriminator_forward.1} parent=1 // pred_check
      _
    $region35: #{discriminator_forward.1} parent=1 // pred_check_branch
      %2173 = sbr.rel (0) target = $region37
    $region36: #{discriminator_forward.1} parent=1 // pred_region
      %2174 = dma.done [#allocation4], 16
    $region37: #{discriminator_forward.1} parent=1 // pred_fallthru
      _
    %2175 = vsyncpa [#allocation4], 1

</llo_original>
